<compile_context>
chip_gen: v7x
topology: tpu7x:2x2x1
jax: 0.10.0
libtpu: 0.0.40
codegen_flags: <defaults>
</compile_context>

<pallas_src>
import jax
import jax.numpy as jnp
import numpy as np
from jax import lax
from jax.experimental import pallas as pl
from jax.experimental.pallas import tpu as pltpu


# ----------------------------------------------------------------------------
# Pallas kernel
# ----------------------------------------------------------------------------
def make_kernel(B, H, W, Cin, P, C4, has_shortcut, fuse):
    """One grid step processes B images (full spatial extent, full channels)."""
    M = B * H * W

    def _shift_rows(r, dy):
        # out[:, y] = r[:, y + dy], zero-filled at the H boundary (static slices,
        # no H-axis rolls).
        if dy == 0:
            return r
        C = r.shape[-1]
        z = jnp.zeros((B, abs(dy), W, C), r.dtype)
        if dy < 0:
            return jnp.concatenate([z, r[:, :H + dy]], axis=1)
        return jnp.concatenate([r[:, dy:], z], axis=1)

    def _shift_cols(t, dx):
        # out[..., x, :] = t[..., x + dx, :], zero outside [0, W).  W-axis roll
        # (sublane rotate) + in-kernel iota validity mask (no HBM mask tensors).
        if dx == 0:
            return t
        s = jnp.roll(t, -dx, axis=2)
        col = lax.broadcasted_iota(jnp.int32, (1, 1, W, 1), 2)
        valid = (col >= -dx) if dx < 0 else (col < W - dx)
        return jnp.where(valid, s, jnp.zeros((), s.dtype))

    def kernel(*refs):
        if fuse:
            (x_ref, wf_ref, w2_ref, w3_ref,
             sb1_ref, sb2_ref, sb3_ref, watt_ref, sash_ref, out_ref) = refs
        elif has_shortcut:
            (x_ref, w1_ref, wsc_ref, w2_ref, w3_ref,
             sb1_ref, sb2_ref, sb3_ref, watt_ref, sash_ref, out_ref) = refs
        else:
            (x_ref, w1_ref, w2_ref, w3_ref,
             sb1_ref, sb2_ref, sb3_ref, watt_ref, sash_ref, out_ref) = refs

        x = x_ref[...].astype(jnp.float32).reshape(M, Cin)

        # --- out = relu(bn1(x)) ------------------------------------------------
        a0 = jnp.maximum(x * sb1_ref[0:1, :] + sb1_ref[1:2, :], 0.0)
        a0b = a0.astype(jnp.bfloat16)

        # --- conv1 (1x1) and shortcut 1x1 ---------------------------------------
        if fuse:                       # only when C4 % 128 == 0 (lane-aligned split)
            fused = jnp.dot(a0b, wf_ref[...], preferred_element_type=jnp.float32)
            sc = fused[:, :C4]
            o1 = fused[:, C4:]
        elif has_shortcut:
            sc = jnp.dot(a0b, wsc_ref[...], preferred_element_type=jnp.float32)
            o1 = jnp.dot(a0b, w1_ref[...], preferred_element_type=jnp.float32)
        else:
            sc = x                     # identity shortcut (Cin == C4), exact f32
            o1 = jnp.dot(a0b, w1_ref[...], preferred_element_type=jnp.float32)

        # --- relu(bn2); W-direction im2col patch built in bf16 (K = 3P) ----------
        a1 = jnp.maximum(o1 * sb2_ref[0:1, :] + sb2_ref[1:2, :], 0.0)
        a1b = a1.astype(jnp.bfloat16).reshape(B, H, W, P)
        pw = jnp.concatenate([_shift_cols(a1b, dx) for dx in (-1, 0, 1)],
                             axis=-1).reshape(M, 3 * P)          # (M, 3P) bf16

        # --- conv2 (3x3, pad=1, stride=1): 3 matmuls (K=3P) over the kernel rows,
        #     combined with cheap H shifts of the (., P) results ------------------
        o2hw = None
        for ky in range(3):
            r = jnp.dot(pw, w2_ref[ky], preferred_element_type=jnp.float32)
            r = _shift_rows(r.reshape(B, H, W, P), ky - 1)
            o2hw = r if o2hw is None else o2hw + r
        o2 = o2hw.reshape(M, P)

        # --- relu(bn3); conv3 (1x1) ----------------------------------------------
        a2 = jnp.maximum(o2 * sb3_ref[0:1, :] + sb3_ref[1:2, :], 0.0)
        o3 = jnp.dot(a2.astype(jnp.bfloat16), w3_ref[...],
                     preferred_element_type=jnp.float32)         # (M, C4)
        o3hw = o3.reshape(B, H, W, C4)

        # --- CBAM spatial attention: 5x5 conv(2->1) on the VPU/XLU (no MXU) -------
        mx = jnp.max(o3hw, axis=-1, keepdims=True)
        mn = jnp.mean(o3hw, axis=-1, keepdims=True)
        mxmn = jnp.concatenate([mx, mn], axis=-1)                # (B, H, W, 2)
        pa = jnp.concatenate([_shift_cols(mxmn, dx) for dx in (-2, -1, 0, 1, 2)],
                             axis=-1)                            # (B, H, W, 10)
        att = None
        for ky in range(5):
            wrow = watt_ref[ky:ky + 1, :].reshape(1, 1, 1, 10)   # sa-BN scale folded in
            r = jnp.sum(pa * wrow, axis=-1, keepdims=True)       # (B, H, W, 1)
            r = _shift_rows(r, ky - 2)
            att = r if att is None else att + r
        att = att + sash_ref[0]                                  # folded sa-BN shift
        att = jax.nn.sigmoid(jax.nn.sigmoid(att))                # double sigmoid (as in module)

        out = o3hw * att + sc.reshape(B, H, W, C4)
        out_ref[...] = out.astype(out_ref.dtype)

    return kernel


# ----------------------------------------------------------------------------
# Wrapper: parameter folding / layout glue + pallas_call (NHWC in, NHWC out)
# ----------------------------------------------------------------------------
def _fold_bn(bn, eps=1e-5):
    gamma, beta, mean, var = bn
    s = gamma / jnp.sqrt(var + eps)
    return jnp.stack([s, beta - mean * s], axis=0).astype(jnp.float32)   # (2, C)


def _generation_budget():
    """(vmem_limit_bytes, max_rows_per_step), sized per TPU generation."""
    kind = ""
    try:
        kind = jax.devices()[0].device_kind.lower()
    except Exception:
        pass
    if "v7" in kind:                       # 64 MiB physical VMEM per TensorCore
        return 40 * 1024 * 1024, 2048
    return 64 * 1024 * 1024, 4096          # v5e / v6e: 128 MiB physical


def _step_vmem_bytes(rows, Cin, P, C4, in_bytes, out_bytes):
    """Rough per-grid-step footprint: double-buffered I/O + live intermediates + weights."""
    io = 2 * rows * Cin * in_bytes + 2 * rows * C4 * out_bytes
    work = rows * (4 * Cin              # x (f32)
                   + 2 * Cin            # a0 (bf16)
                   + 4 * C4             # shortcut (f32)
                   + 4 * 4 * P          # o1 / a1 / o2 / a2 (f32)
                   + 2 * 3 * P          # bf16 im2col patch (K = 3P)
                   + 4 * 2 * P          # conv2 row partials (f32)
                   + 4 * 2 * C4         # o3 + output staging
                   + 4 * 16)            # attention maps / patch
    weights = 2 * 2 * (Cin * (C4 + P) + 9 * P * P + P * C4)    # bf16, double-buffered
    return int(1.5 * (io + work)) + weights


def _pick_batch_tile(N, H, W, Cin, P, C4, in_bytes, out_bytes, vmem_budget, max_rows):
    hw = H * W
    cap = N if N < 2 else N // 2   # keep >= 2 grid steps so both v7x TensorCores get work
    best = 1
    for b in range(1, cap + 1):
        if N % b:
            continue
        if b * hw > max_rows:
            break
        if _step_vmem_bytes(b * hw, Cin, P, C4, in_bytes, out_bytes) > 0.75 * vmem_budget:
            break
        best = b
    return best


def preact_bottleneck_nhwc(x_nhwc, params, *, stride=1, out_dtype=jnp.float32):
    """x_nhwc: (N, H, W, Cin) -> (N, H, W, 4*planes), NHWC."""
    assert stride == 1, "kernel implements stride=1 only"   # TODO(synk): stride=2 path
    N, H, W, Cin = x_nhwc.shape
    P = params['w1'].shape[0]
    C4 = 4 * P
    has_shortcut = (stride != 1) or (Cin != C4)
    # Fuse conv1 + shortcut into one matmul only when the split point (C4) is
    # lane-aligned; otherwise the mid-lane slice costs more than the fusion saves.
    fuse = has_shortcut and (C4 % 128 == 0)

    # bf16 input DMA when the residual goes through the shortcut conv anyway;
    # keep the identity-residual path in f32 so the skip connection is exact.
    in_dtype = jnp.bfloat16 if has_shortcut else jnp.float32
    x_in = x_nhwc.astype(in_dtype)

    vmem_limit, max_rows = _generation_budget()
    B = _pick_batch_tile(N, H, W, Cin, P, C4,
                         jnp.dtype(in_dtype).itemsize, jnp.dtype(out_dtype).itemsize,
                         vmem_limit, max_rows)

    # conv weights -> matmul layouts (bf16 operands, f32 accumulation)
    w1 = params['w1'][:, :, 0, 0].T                                        # (Cin, P)
    w3b = params['w3'][:, :, 0, 0].T.astype(jnp.bfloat16)                  # (P, C4)
    # conv2 grouped by kernel row: w2rows[ky, kx*P + ci, co] = w2[co, ci, ky, kx]
    w2rows = jnp.transpose(params['w2'], (2, 3, 1, 0)).reshape(3, 3 * P, P)
    w2rows = w2rows.astype(jnp.bfloat16)

    sb1 = _fold_bn(params['bn1'])
    sb2 = _fold_bn(params['bn2'])
    sb3 = _fold_bn(params['bn3'])

    # CBAM 5x5 weights grouped by kernel row with the sa-BN scale folded in (f32):
    # watt_rows[ky, 2*kx + c] = w_att[0, c, ky, kx] * scale
    g, b_, m, v = params['sa_bn']
    s = (g / jnp.sqrt(v + 1e-5))[0]
    watt_rows = (jnp.transpose(params['w_att'][0], (1, 2, 0)).reshape(5, 10) * s
                 ).astype(jnp.float32)                                     # (5, 10)
    sash = jnp.asarray([b_[0] - m[0] * s], jnp.float32)                    # (1,)

    kernel = make_kernel(B, H, W, Cin, P, C4, has_shortcut, fuse)

    def full(a):
        zeros = (0,) * a.ndim
        return pl.BlockSpec(a.shape, lambda n, z=zeros: z)

    operands = [x_in]
    in_specs = [pl.BlockSpec((B, H, W, Cin), lambda n: (n, 0, 0, 0))]
    if fuse:
        wsc = params['w_sc'][:, :, 0, 0].T                                 # (Cin, C4)
        wf = jnp.concatenate([wsc, w1], axis=1).astype(jnp.bfloat16)       # (Cin, C4+P)
        operands += [wf]
        in_specs += [full(wf)]
    elif has_shortcut:
        w1b = w1.astype(jnp.bfloat16)
        wscb = params['w_sc'][:, :, 0, 0].T.astype(jnp.bfloat16)
        operands += [w1b, wscb]
        in_specs += [full(w1b), full(wscb)]
    else:
        w1b = w1.astype(jnp.bfloat16)
        operands += [w1b]
        in_specs += [full(w1b)]

    operands += [w2rows, w3b, sb1, sb2, sb3, watt_rows, sash]
    in_specs += [full(w2rows), full(w3b), full(sb1), full(sb2), full(sb3),
                 full(watt_rows),
                 pl.BlockSpec(memory_space=pltpu.MemorySpace.SMEM)]

    out = pl.pallas_call(
        kernel,
        out_shape=jax.ShapeDtypeStruct((N, H, W, C4), out_dtype),
        grid=(N // B,),
        in_specs=in_specs,
        out_specs=pl.BlockSpec((B, H, W, C4), lambda n: (n, 0, 0, 0)),
        compiler_params=pltpu.CompilerParams(
            dimension_semantics=("parallel",),      # batch steps are independent
            vmem_limit_bytes=int(vmem_limit)),
    )(*operands)

    return out


# ----------------------------------------------------------------------------
# Pure-JAX reference (NCHW, XLA convs) for verification only
# ----------------------------------------------------------------------------
def reference(x, params):
    def bn(t, bnp, eps=1e-5):
        g, b, m, v = bnp
        s = g / jnp.sqrt(v + eps)
        return t * s[None, :, None, None] + (b - m * s)[None, :, None, None]

    def conv(t, w, pad):
        return lax.conv_general_dilated(
            t, w, (1, 1), [(pad, pad), (pad, pad)],
            dimension_numbers=('NCHW', 'OIHW', 'NCHW'))

    N, Cin, H, W = x.shape
    P = params['w1'].shape[0]
    has_shortcut = Cin != 4 * P

    a0 = jax.nn.relu(bn(x, params['bn1']))
    sc = conv(a0, params['w_sc'], 0) if has_shortcut else x
    o1 = conv(a0, params['w1'], 0)
    o2 = conv(jax.nn.relu(bn(o1, params['bn2'])), params['w2'], 1)
    o3 = conv(jax.nn.relu(bn(o2, params['bn3'])), params['w3'], 0)

    mx = jnp.max(o3, axis=1, keepdims=True)
    mn = jnp.mean(o3, axis=1, keepdims=True)
    y = jnp.concatenate([mx, mn], axis=1)
    y = conv(y, params['w_att'], 2)
    y = bn(y, params['sa_bn'])
    y = jax.nn.sigmoid(y)
    out = o3 * jax.nn.sigmoid(y)
    return out + sc


# ----------------------------------------------------------------------------
if __name__ == "__main__":
    key = jax.random.PRNGKey(0)
    N, Cin, P, H, W = 2, 16, 8, 8, 8
    C4 = 4 * P

    keys = jax.random.split(key, 12)

    def bn_params(k, C):
        k1, k2, k3, k4 = jax.random.split(k, 4)
        gamma = (1.0 + 0.1 * jax.random.normal(k1, (C,))).astype(jnp.float32)
        beta = (0.1 * jax.random.normal(k2, (C,))).astype(jnp.float32)
        mean = (0.1 * jax.random.normal(k3, (C,))).astype(jnp.float32)
        var = (0.5 + jax.random.uniform(k4, (C,))).astype(jnp.float32)
        return (gamma, beta, mean, var)

    params = {
        'bn1':   bn_params(keys[0], Cin),
        'w1':    (0.2 * jax.random.normal(keys[1], (P, Cin, 1, 1))).astype(jnp.float32),
        'bn2':   bn_params(keys[2], P),
        'w2':    (0.2 * jax.random.normal(keys[3], (P, P, 3, 3))).astype(jnp.float32),
        'bn3':   bn_params(keys[4], P),
        'w3':    (0.2 * jax.random.normal(keys[5], (C4, P, 1, 1))).astype(jnp.float32),
        'w_sc':  (0.2 * jax.random.normal(keys[6], (C4, Cin, 1, 1))).astype(jnp.float32),
        'w_att': (0.2 * jax.random.normal(keys[7], (1, 2, 5, 5))).astype(jnp.float32),
        'sa_bn': bn_params(keys[8], 1),
    }

    x_nhwc = jax.random.normal(keys[9], (N, H, W, Cin), jnp.float32)

    out_nhwc = preact_bottleneck_nhwc(x_nhwc, params, stride=1)
    out_nhwc = jax.block_until_ready(out_nhwc)

    # verification (cold path): NCHW reference, compared in NHWC
    x_nchw = jnp.transpose(x_nhwc, (0, 3, 1, 2))
    ref_nhwc = jnp.transpose(reference(x_nchw, params), (0, 2, 3, 1))

    assert out_nhwc.shape == ref_nhwc.shape == (N, H, W, C4)
    # tolerance accommodates bf16 matmul operands (accumulation is f32)
    assert np.allclose(np.asarray(out_nhwc), np.asarray(ref_nhwc),
                       atol=3e-2, rtol=3e-2), \
        "Pallas kernel does not match JAX reference"

    print("KERNEL_OK")
</pallas_src>

<mosaic_0001>
module attributes {stable_mosaic.version = 11 : i64} {
  func.func @kernel(%arg0: i32, %arg1: memref<1x8x8x16xbf16, #tpu.memory_space<vmem>>, %arg2: memref<16x8xbf16, #tpu.memory_space<vmem>>, %arg3: memref<16x32xbf16, #tpu.memory_space<vmem>>, %arg4: memref<3x24x8xbf16, #tpu.memory_space<vmem>>, %arg5: memref<8x32xbf16, #tpu.memory_space<vmem>>, %arg6: memref<2x16xf32, #tpu.memory_space<vmem>>, %arg7: memref<2x8xf32, #tpu.memory_space<vmem>>, %arg8: memref<2x8xf32, #tpu.memory_space<vmem>>, %arg9: memref<5x10xf32, #tpu.memory_space<vmem>>, %arg10: memref<1xf32, #tpu.memory_space<smem>>, %arg11: memref<1x8x8x32xf32, #tpu.memory_space<vmem>>) attributes {dimension_semantics = [#tpu.dimension_semantics<parallel>], iteration_bounds = array<i64: 2>, scalar_prefetch = 0 : i64, scratch_operands = 0 : i64, tpu.core_type = #tpu.core_type<tc>, window_params = [{transform_indices = @transform_0, window_bounds = array<i64: 1, 8, 8, 16>}, {pipeline_mode = #tpu.pipeline_mode<synchronous>, transform_indices = @transform_1, window_bounds = array<i64: 16, 8>}, {pipeline_mode = #tpu.pipeline_mode<synchronous>, transform_indices = @transform_2, window_bounds = array<i64: 16, 32>}, {pipeline_mode = #tpu.pipeline_mode<synchronous>, transform_indices = @transform_3, window_bounds = array<i64: 3, 24, 8>}, {pipeline_mode = #tpu.pipeline_mode<synchronous>, transform_indices = @transform_4, window_bounds = array<i64: 8, 32>}, {pipeline_mode = #tpu.pipeline_mode<synchronous>, transform_indices = @transform_5, window_bounds = array<i64: 2, 16>}, {pipeline_mode = #tpu.pipeline_mode<synchronous>, transform_indices = @transform_6, window_bounds = array<i64: 2, 8>}, {pipeline_mode = #tpu.pipeline_mode<synchronous>, transform_indices = @transform_7, window_bounds = array<i64: 2, 8>}, {pipeline_mode = #tpu.pipeline_mode<synchronous>, transform_indices = @transform_8, window_bounds = array<i64: 5, 10>}, {transform_indices = @transform_9, window_bounds = array<i64: 1>}, {transform_indices = @transform_10, window_bounds = array<i64: 1, 8, 8, 32>}]} {
    %c0 = arith.constant 0 : index
    %c0_0 = arith.constant 0 : index
    %c0_1 = arith.constant 0 : index
    %c0_2 = arith.constant 0 : index
    %0 = vector.load %arg1[%c0, %c0_0, %c0_1, %c0_2] : memref<1x8x8x16xbf16, #tpu.memory_space<vmem>>, vector<1x8x8x16xbf16>
    %1 = arith.extf %0 : vector<1x8x8x16xbf16> to vector<1x8x8x16xf32>
    %2 = vector.shape_cast %1 : vector<1x8x8x16xf32> to vector<64x16xf32>
    %c0_3 = arith.constant 0 : index
    %c0_4 = arith.constant 0 : index
    %3 = vector.load %arg6[%c0_3, %c0_4] : memref<2x16xf32, #tpu.memory_space<vmem>>, vector<1x16xf32>
    %4 = vector.broadcast %3 : vector<1x16xf32> to vector<64x16xf32>
    %5 = arith.mulf %2, %4 : vector<64x16xf32>
    %c1 = arith.constant 1 : index
    %c0_5 = arith.constant 0 : index
    %6 = vector.load %arg6[%c1, %c0_5] : memref<2x16xf32, #tpu.memory_space<vmem>>, vector<1x16xf32>
    %7 = vector.broadcast %6 : vector<1x16xf32> to vector<64x16xf32>
    %8 = arith.addf %5, %7 : vector<64x16xf32>
    %cst = arith.constant 0.000000e+00 : f32
    %9 = vector.broadcast %cst : f32 to vector<64x16xf32>
    %10 = arith.maximumf %8, %9 : vector<64x16xf32>
    %11 = arith.truncf %10 : vector<64x16xf32> to vector<64x16xbf16>
    %c0_6 = arith.constant 0 : index
    %c0_7 = arith.constant 0 : index
    %12 = vector.load %arg3[%c0_6, %c0_7] : memref<16x32xbf16, #tpu.memory_space<vmem>>, vector<16x32xbf16>
    %cst_8 = arith.constant dense<0.000000e+00> : vector<64x32xf32>
    %13 = tpu.matmul %11, %12, %cst_8 {dimension_numbers = #tpu.dot_dimension_numbers<[1], [0], [0], [1], [0, 0, 1, 1], [], []>} : vector<64x16xbf16>, vector<16x32xbf16>, vector<64x32xf32> -> vector<64x32xf32>
    %c0_9 = arith.constant 0 : index
    %c0_10 = arith.constant 0 : index
    %14 = vector.load %arg2[%c0_9, %c0_10] : memref<16x8xbf16, #tpu.memory_space<vmem>>, vector<16x8xbf16>
    %cst_11 = arith.constant dense<0.000000e+00> : vector<64x8xf32>
    %15 = tpu.matmul %11, %14, %cst_11 {dimension_numbers = #tpu.dot_dimension_numbers<[1], [0], [0], [1], [0, 0, 1, 1], [], []>} : vector<64x16xbf16>, vector<16x8xbf16>, vector<64x8xf32> -> vector<64x8xf32>
    %c0_12 = arith.constant 0 : index
    %c0_13 = arith.constant 0 : index
    %16 = vector.load %arg7[%c0_12, %c0_13] : memref<2x8xf32, #tpu.memory_space<vmem>>, vector<1x8xf32>
    %17 = vector.broadcast %16 : vector<1x8xf32> to vector<64x8xf32>
    %18 = arith.mulf %15, %17 : vector<64x8xf32>
    %c1_14 = arith.constant 1 : index
    %c0_15 = arith.constant 0 : index
    %19 = vector.load %arg7[%c1_14, %c0_15] : memref<2x8xf32, #tpu.memory_space<vmem>>, vector<1x8xf32>
    %20 = vector.broadcast %19 : vector<1x8xf32> to vector<64x8xf32>
    %21 = arith.addf %18, %20 : vector<64x8xf32>
    %cst_16 = arith.constant 0.000000e+00 : f32
    %22 = vector.broadcast %cst_16 : f32 to vector<64x8xf32>
    %23 = arith.maximumf %21, %22 : vector<64x8xf32>
    %24 = arith.truncf %23 : vector<64x8xf32> to vector<64x8xbf16>
    %25 = vector.shape_cast %24 : vector<64x8xbf16> to vector<1x8x8x8xbf16>
    %26 = vector.extract_strided_slice %25 {offsets = [0, 0, 7, 0], sizes = [1, 8, 1, 8], strides = [1, 1, 1, 1]} : vector<1x8x8x8xbf16> to vector<1x8x1x8xbf16>
    %27 = vector.extract_strided_slice %25 {offsets = [0, 0, 0, 0], sizes = [1, 8, 7, 8], strides = [1, 1, 1, 1]} : vector<1x8x8x8xbf16> to vector<1x8x7x8xbf16>
    %28 = tpu.concatenate %26, %27 in 2 : vector<1x8x1x8xbf16>, vector<1x8x7x8xbf16> -> vector<1x8x8x8xbf16>
    %29 = tpu.iota {dimensions = array<i32: 2>} : vector<1x1x8x1xi32>
    %c1_i32 = arith.constant 1 : i32
    %30 = vector.broadcast %c1_i32 : i32 to vector<1x1x8x1xi32>
    %31 = arith.cmpi sge, %29, %30 : vector<1x1x8x1xi32>
    %cst_17 = arith.constant 0.000000e+00 : bf16
    %32 = vector.shape_cast %31 : vector<1x1x8x1xi1> to vector<1x1x8x1xi1>
    %33 = vector.broadcast %32 : vector<1x1x8x1xi1> to vector<1x8x8x8xi1>
    %34 = vector.broadcast %cst_17 : bf16 to vector<1x8x8x8xbf16>
    %35 = arith.select %33, %28, %34 : vector<1x8x8x8xi1>, vector<1x8x8x8xbf16>
    %36 = vector.extract_strided_slice %25 {offsets = [0, 0, 1, 0], sizes = [1, 8, 7, 8], strides = [1, 1, 1, 1]} : vector<1x8x8x8xbf16> to vector<1x8x7x8xbf16>
    %37 = vector.extract_strided_slice %25 {offsets = [0, 0, 0, 0], sizes = [1, 8, 1, 8], strides = [1, 1, 1, 1]} : vector<1x8x8x8xbf16> to vector<1x8x1x8xbf16>
    %38 = tpu.concatenate %36, %37 in 2 : vector<1x8x7x8xbf16>, vector<1x8x1x8xbf16> -> vector<1x8x8x8xbf16>
    %39 = tpu.iota {dimensions = array<i32: 2>} : vector<1x1x8x1xi32>
    %c7_i32 = arith.constant 7 : i32
    %40 = vector.broadcast %c7_i32 : i32 to vector<1x1x8x1xi32>
    %41 = arith.cmpi slt, %39, %40 : vector<1x1x8x1xi32>
    %cst_18 = arith.constant 0.000000e+00 : bf16
    %42 = vector.shape_cast %41 : vector<1x1x8x1xi1> to vector<1x1x8x1xi1>
    %43 = vector.broadcast %42 : vector<1x1x8x1xi1> to vector<1x8x8x8xi1>
    %44 = vector.broadcast %cst_18 : bf16 to vector<1x8x8x8xbf16>
    %45 = arith.select %43, %38, %44 : vector<1x8x8x8xi1>, vector<1x8x8x8xbf16>
    %46 = tpu.concatenate %35, %25, %45 in 3 : vector<1x8x8x8xbf16>, vector<1x8x8x8xbf16>, vector<1x8x8x8xbf16> -> vector<1x8x8x24xbf16>
    %47 = vector.shape_cast %46 : vector<1x8x8x24xbf16> to vector<64x24xbf16>
    %c0_19 = arith.constant 0 : index
    %c0_20 = arith.constant 0 : index
    %c0_21 = arith.constant 0 : index
    %48 = vector.load %arg4[%c0_19, %c0_20, %c0_21] : memref<3x24x8xbf16, #tpu.memory_space<vmem>>, vector<1x24x8xbf16>
    %49 = vector.shape_cast %48 : vector<1x24x8xbf16> to vector<24x8xbf16>
    %cst_22 = arith.constant dense<0.000000e+00> : vector<64x8xf32>
    %50 = tpu.matmul %47, %49, %cst_22 {dimension_numbers = #tpu.dot_dimension_numbers<[1], [0], [0], [1], [0, 0, 1, 1], [], []>} : vector<64x24xbf16>, vector<24x8xbf16>, vector<64x8xf32> -> vector<64x8xf32>
    %51 = vector.shape_cast %50 : vector<64x8xf32> to vector<1x8x8x8xf32>
    %cst_23 = arith.constant 0.000000e+00 : f32
    %52 = vector.broadcast %cst_23 : f32 to vector<1x1x8x8xf32>
    %53 = vector.extract_strided_slice %51 {offsets = [0, 0, 0, 0], sizes = [1, 7, 8, 8], strides = [1, 1, 1, 1]} : vector<1x8x8x8xf32> to vector<1x7x8x8xf32>
    %54 = tpu.concatenate %52, %53 in 1 : vector<1x1x8x8xf32>, vector<1x7x8x8xf32> -> vector<1x8x8x8xf32>
    %c1_24 = arith.constant 1 : index
    %c0_25 = arith.constant 0 : index
    %c0_26 = arith.constant 0 : index
    %55 = vector.load %arg4[%c1_24, %c0_25, %c0_26] : memref<3x24x8xbf16, #tpu.memory_space<vmem>>, vector<1x24x8xbf16>
    %56 = vector.shape_cast %55 : vector<1x24x8xbf16> to vector<24x8xbf16>
    %cst_27 = arith.constant dense<0.000000e+00> : vector<64x8xf32>
    %57 = tpu.matmul %47, %56, %cst_27 {dimension_numbers = #tpu.dot_dimension_numbers<[1], [0], [0], [1], [0, 0, 1, 1], [], []>} : vector<64x24xbf16>, vector<24x8xbf16>, vector<64x8xf32> -> vector<64x8xf32>
    %58 = vector.shape_cast %57 : vector<64x8xf32> to vector<1x8x8x8xf32>
    %59 = arith.addf %54, %58 : vector<1x8x8x8xf32>
    %c2 = arith.constant 2 : index
    %c0_28 = arith.constant 0 : index
    %c0_29 = arith.constant 0 : index
    %60 = vector.load %arg4[%c2, %c0_28, %c0_29] : memref<3x24x8xbf16, #tpu.memory_space<vmem>>, vector<1x24x8xbf16>
    %61 = vector.shape_cast %60 : vector<1x24x8xbf16> to vector<24x8xbf16>
    %cst_30 = arith.constant dense<0.000000e+00> : vector<64x8xf32>
    %62 = tpu.matmul %47, %61, %cst_30 {dimension_numbers = #tpu.dot_dimension_numbers<[1], [0], [0], [1], [0, 0, 1, 1], [], []>} : vector<64x24xbf16>, vector<24x8xbf16>, vector<64x8xf32> -> vector<64x8xf32>
    %63 = vector.shape_cast %62 : vector<64x8xf32> to vector<1x8x8x8xf32>
    %cst_31 = arith.constant 0.000000e+00 : f32
    %64 = vector.broadcast %cst_31 : f32 to vector<1x1x8x8xf32>
    %65 = vector.extract_strided_slice %63 {offsets = [0, 1, 0, 0], sizes = [1, 7, 8, 8], strides = [1, 1, 1, 1]} : vector<1x8x8x8xf32> to vector<1x7x8x8xf32>
    %66 = tpu.concatenate %65, %64 in 1 : vector<1x7x8x8xf32>, vector<1x1x8x8xf32> -> vector<1x8x8x8xf32>
    %67 = arith.addf %59, %66 : vector<1x8x8x8xf32>
    %68 = vector.shape_cast %67 : vector<1x8x8x8xf32> to vector<64x8xf32>
    %c0_32 = arith.constant 0 : index
    %c0_33 = arith.constant 0 : index
    %69 = vector.load %arg8[%c0_32, %c0_33] : memref<2x8xf32, #tpu.memory_space<vmem>>, vector<1x8xf32>
    %70 = vector.broadcast %69 : vector<1x8xf32> to vector<64x8xf32>
    %71 = arith.mulf %68, %70 : vector<64x8xf32>
    %c1_34 = arith.constant 1 : index
    %c0_35 = arith.constant 0 : index
    %72 = vector.load %arg8[%c1_34, %c0_35] : memref<2x8xf32, #tpu.memory_space<vmem>>, vector<1x8xf32>
    %73 = vector.broadcast %72 : vector<1x8xf32> to vector<64x8xf32>
    %74 = arith.addf %71, %73 : vector<64x8xf32>
    %cst_36 = arith.constant 0.000000e+00 : f32
    %75 = vector.broadcast %cst_36 : f32 to vector<64x8xf32>
    %76 = arith.maximumf %74, %75 : vector<64x8xf32>
    %77 = arith.truncf %76 : vector<64x8xf32> to vector<64x8xbf16>
    %c0_37 = arith.constant 0 : index
    %c0_38 = arith.constant 0 : index
    %78 = vector.load %arg5[%c0_37, %c0_38] : memref<8x32xbf16, #tpu.memory_space<vmem>>, vector<8x32xbf16>
    %cst_39 = arith.constant dense<0.000000e+00> : vector<64x32xf32>
    %79 = tpu.matmul %77, %78, %cst_39 {dimension_numbers = #tpu.dot_dimension_numbers<[1], [0], [0], [1], [0, 0, 1, 1], [], []>} : vector<64x8xbf16>, vector<8x32xbf16>, vector<64x32xf32> -> vector<64x32xf32>
    %80 = vector.shape_cast %79 : vector<64x32xf32> to vector<1x8x8x32xf32>
    %cst_40 = arith.constant dense<0xFF800000> : vector<1x8x8xf32>
    %81 = vector.multi_reduction <maximumf>, %80, %cst_40 [3] : vector<1x8x8x32xf32> to vector<1x8x8xf32>
    %82 = vector.shape_cast %81 : vector<1x8x8xf32> to vector<1x8x8x1xf32>
    %cst_41 = arith.constant dense<0.000000e+00> : vector<1x8x8xf32>
    %83 = vector.multi_reduction <add>, %80, %cst_41 [3] : vector<1x8x8x32xf32> to vector<1x8x8xf32>
    %84 = vector.shape_cast %83 : vector<1x8x8xf32> to vector<1x8x8x1xf32>
    %cst_42 = arith.constant 3.200000e+01 : f32
    %85 = vector.broadcast %cst_42 : f32 to vector<1x8x8x1xf32>
    %86 = arith.divf %84, %85 : vector<1x8x8x1xf32>
    %87 = tpu.concatenate %82, %86 in 3 : vector<1x8x8x1xf32>, vector<1x8x8x1xf32> -> vector<1x8x8x2xf32>
    %88 = vector.extract_strided_slice %87 {offsets = [0, 0, 6, 0], sizes = [1, 8, 2, 2], strides = [1, 1, 1, 1]} : vector<1x8x8x2xf32> to vector<1x8x2x2xf32>
    %89 = vector.extract_strided_slice %87 {offsets = [0, 0, 0, 0], sizes = [1, 8, 6, 2], strides = [1, 1, 1, 1]} : vector<1x8x8x2xf32> to vector<1x8x6x2xf32>
    %90 = tpu.concatenate %88, %89 in 2 : vector<1x8x2x2xf32>, vector<1x8x6x2xf32> -> vector<1x8x8x2xf32>
    %91 = tpu.iota {dimensions = array<i32: 2>} : vector<1x1x8x1xi32>
    %c2_i32 = arith.constant 2 : i32
    %92 = vector.broadcast %c2_i32 : i32 to vector<1x1x8x1xi32>
    %93 = arith.cmpi sge, %91, %92 : vector<1x1x8x1xi32>
    %cst_43 = arith.constant 0.000000e+00 : f32
    %94 = vector.shape_cast %93 : vector<1x1x8x1xi1> to vector<1x1x8x1xi1>
    %95 = vector.broadcast %94 : vector<1x1x8x1xi1> to vector<1x8x8x2xi1>
    %96 = vector.broadcast %cst_43 : f32 to vector<1x8x8x2xf32>
    %97 = arith.select %95, %90, %96 : vector<1x8x8x2xi1>, vector<1x8x8x2xf32>
    %98 = vector.extract_strided_slice %87 {offsets = [0, 0, 7, 0], sizes = [1, 8, 1, 2], strides = [1, 1, 1, 1]} : vector<1x8x8x2xf32> to vector<1x8x1x2xf32>
    %99 = vector.extract_strided_slice %87 {offsets = [0, 0, 0, 0], sizes = [1, 8, 7, 2], strides = [1, 1, 1, 1]} : vector<1x8x8x2xf32> to vector<1x8x7x2xf32>
    %100 = tpu.concatenate %98, %99 in 2 : vector<1x8x1x2xf32>, vector<1x8x7x2xf32> -> vector<1x8x8x2xf32>
    %101 = tpu.iota {dimensions = array<i32: 2>} : vector<1x1x8x1xi32>
    %c1_i32_44 = arith.constant 1 : i32
    %102 = vector.broadcast %c1_i32_44 : i32 to vector<1x1x8x1xi32>
    %103 = arith.cmpi sge, %101, %102 : vector<1x1x8x1xi32>
    %cst_45 = arith.constant 0.000000e+00 : f32
    %104 = vector.shape_cast %103 : vector<1x1x8x1xi1> to vector<1x1x8x1xi1>
    %105 = vector.broadcast %104 : vector<1x1x8x1xi1> to vector<1x8x8x2xi1>
    %106 = vector.broadcast %cst_45 : f32 to vector<1x8x8x2xf32>
    %107 = arith.select %105, %100, %106 : vector<1x8x8x2xi1>, vector<1x8x8x2xf32>
    %108 = vector.extract_strided_slice %87 {offsets = [0, 0, 1, 0], sizes = [1, 8, 7, 2], strides = [1, 1, 1, 1]} : vector<1x8x8x2xf32> to vector<1x8x7x2xf32>
    %109 = vector.extract_strided_slice %87 {offsets = [0, 0, 0, 0], sizes = [1, 8, 1, 2], strides = [1, 1, 1, 1]} : vector<1x8x8x2xf32> to vector<1x8x1x2xf32>
    %110 = tpu.concatenate %108, %109 in 2 : vector<1x8x7x2xf32>, vector<1x8x1x2xf32> -> vector<1x8x8x2xf32>
    %111 = tpu.iota {dimensions = array<i32: 2>} : vector<1x1x8x1xi32>
    %c7_i32_46 = arith.constant 7 : i32
    %112 = vector.broadcast %c7_i32_46 : i32 to vector<1x1x8x1xi32>
    %113 = arith.cmpi slt, %111, %112 : vector<1x1x8x1xi32>
    %cst_47 = arith.constant 0.000000e+00 : f32
    %114 = vector.shape_cast %113 : vector<1x1x8x1xi1> to vector<1x1x8x1xi1>
    %115 = vector.broadcast %114 : vector<1x1x8x1xi1> to vector<1x8x8x2xi1>
    %116 = vector.broadcast %cst_47 : f32 to vector<1x8x8x2xf32>
    %117 = arith.select %115, %110, %116 : vector<1x8x8x2xi1>, vector<1x8x8x2xf32>
    %118 = vector.extract_strided_slice %87 {offsets = [0, 0, 2, 0], sizes = [1, 8, 6, 2], strides = [1, 1, 1, 1]} : vector<1x8x8x2xf32> to vector<1x8x6x2xf32>
    %119 = vector.extract_strided_slice %87 {offsets = [0, 0, 0, 0], sizes = [1, 8, 2, 2], strides = [1, 1, 1, 1]} : vector<1x8x8x2xf32> to vector<1x8x2x2xf32>
    %120 = tpu.concatenate %118, %119 in 2 : vector<1x8x6x2xf32>, vector<1x8x2x2xf32> -> vector<1x8x8x2xf32>
    %121 = tpu.iota {dimensions = array<i32: 2>} : vector<1x1x8x1xi32>
    %c6_i32 = arith.constant 6 : i32
    %122 = vector.broadcast %c6_i32 : i32 to vector<1x1x8x1xi32>
    %123 = arith.cmpi slt, %121, %122 : vector<1x1x8x1xi32>
    %cst_48 = arith.constant 0.000000e+00 : f32
    %124 = vector.shape_cast %123 : vector<1x1x8x1xi1> to vector<1x1x8x1xi1>
    %125 = vector.broadcast %124 : vector<1x1x8x1xi1> to vector<1x8x8x2xi1>
    %126 = vector.broadcast %cst_48 : f32 to vector<1x8x8x2xf32>
    %127 = arith.select %125, %120, %126 : vector<1x8x8x2xi1>, vector<1x8x8x2xf32>
    %128 = tpu.concatenate %97, %107, %87, %117, %127 in 3 : vector<1x8x8x2xf32>, vector<1x8x8x2xf32>, vector<1x8x8x2xf32>, vector<1x8x8x2xf32>, vector<1x8x8x2xf32> -> vector<1x8x8x10xf32>
    %c0_49 = arith.constant 0 : index
    %c0_50 = arith.constant 0 : index
    %129 = vector.load %arg9[%c0_49, %c0_50] : memref<5x10xf32, #tpu.memory_space<vmem>>, vector<1x10xf32>
    %130 = vector.shape_cast %129 : vector<1x10xf32> to vector<1x1x1x10xf32>
    %131 = vector.broadcast %130 : vector<1x1x1x10xf32> to vector<1x8x8x10xf32>
    %132 = arith.mulf %128, %131 : vector<1x8x8x10xf32>
    %cst_51 = arith.constant dense<0.000000e+00> : vector<1x8x8xf32>
    %133 = vector.multi_reduction <add>, %132, %cst_51 [3] : vector<1x8x8x10xf32> to vector<1x8x8xf32>
    %134 = vector.shape_cast %133 : vector<1x8x8xf32> to vector<1x8x8x1xf32>
    %cst_52 = arith.constant 0.000000e+00 : f32
    %135 = vector.broadcast %cst_52 : f32 to vector<1x2x8x1xf32>
    %136 = vector.extract_strided_slice %134 {offsets = [0, 0, 0, 0], sizes = [1, 6, 8, 1], strides = [1, 1, 1, 1]} : vector<1x8x8x1xf32> to vector<1x6x8x1xf32>
    %137 = tpu.concatenate %135, %136 in 1 : vector<1x2x8x1xf32>, vector<1x6x8x1xf32> -> vector<1x8x8x1xf32>
    %c1_53 = arith.constant 1 : index
    %c0_54 = arith.constant 0 : index
    %138 = vector.load %arg9[%c1_53, %c0_54] : memref<5x10xf32, #tpu.memory_space<vmem>>, vector<1x10xf32>
    %139 = vector.shape_cast %138 : vector<1x10xf32> to vector<1x1x1x10xf32>
    %140 = vector.broadcast %139 : vector<1x1x1x10xf32> to vector<1x8x8x10xf32>
    %141 = arith.mulf %128, %140 : vector<1x8x8x10xf32>
    %cst_55 = arith.constant dense<0.000000e+00> : vector<1x8x8xf32>
    %142 = vector.multi_reduction <add>, %141, %cst_55 [3] : vector<1x8x8x10xf32> to vector<1x8x8xf32>
    %143 = vector.shape_cast %142 : vector<1x8x8xf32> to vector<1x8x8x1xf32>
    %cst_56 = arith.constant 0.000000e+00 : f32
    %144 = vector.broadcast %cst_56 : f32 to vector<1x1x8x1xf32>
    %145 = vector.extract_strided_slice %143 {offsets = [0, 0, 0, 0], sizes = [1, 7, 8, 1], strides = [1, 1, 1, 1]} : vector<1x8x8x1xf32> to vector<1x7x8x1xf32>
    %146 = tpu.concatenate %144, %145 in 1 : vector<1x1x8x1xf32>, vector<1x7x8x1xf32> -> vector<1x8x8x1xf32>
    %147 = arith.addf %137, %146 : vector<1x8x8x1xf32>
    %c2_57 = arith.constant 2 : index
    %c0_58 = arith.constant 0 : index
    %148 = vector.load %arg9[%c2_57, %c0_58] : memref<5x10xf32, #tpu.memory_space<vmem>>, vector<1x10xf32>
    %149 = vector.shape_cast %148 : vector<1x10xf32> to vector<1x1x1x10xf32>
    %150 = vector.broadcast %149 : vector<1x1x1x10xf32> to vector<1x8x8x10xf32>
    %151 = arith.mulf %128, %150 : vector<1x8x8x10xf32>
    %cst_59 = arith.constant dense<0.000000e+00> : vector<1x8x8xf32>
    %152 = vector.multi_reduction <add>, %151, %cst_59 [3] : vector<1x8x8x10xf32> to vector<1x8x8xf32>
    %153 = vector.shape_cast %152 : vector<1x8x8xf32> to vector<1x8x8x1xf32>
    %154 = arith.addf %147, %153 : vector<1x8x8x1xf32>
    %c3 = arith.constant 3 : index
    %c0_60 = arith.constant 0 : index
    %155 = vector.load %arg9[%c3, %c0_60] : memref<5x10xf32, #tpu.memory_space<vmem>>, vector<1x10xf32>
    %156 = vector.shape_cast %155 : vector<1x10xf32> to vector<1x1x1x10xf32>
    %157 = vector.broadcast %156 : vector<1x1x1x10xf32> to vector<1x8x8x10xf32>
    %158 = arith.mulf %128, %157 : vector<1x8x8x10xf32>
    %cst_61 = arith.constant dense<0.000000e+00> : vector<1x8x8xf32>
    %159 = vector.multi_reduction <add>, %158, %cst_61 [3] : vector<1x8x8x10xf32> to vector<1x8x8xf32>
    %160 = vector.shape_cast %159 : vector<1x8x8xf32> to vector<1x8x8x1xf32>
    %cst_62 = arith.constant 0.000000e+00 : f32
    %161 = vector.broadcast %cst_62 : f32 to vector<1x1x8x1xf32>
    %162 = vector.extract_strided_slice %160 {offsets = [0, 1, 0, 0], sizes = [1, 7, 8, 1], strides = [1, 1, 1, 1]} : vector<1x8x8x1xf32> to vector<1x7x8x1xf32>
    %163 = tpu.concatenate %162, %161 in 1 : vector<1x7x8x1xf32>, vector<1x1x8x1xf32> -> vector<1x8x8x1xf32>
    %164 = arith.addf %154, %163 : vector<1x8x8x1xf32>
    %c4 = arith.constant 4 : index
    %c0_63 = arith.constant 0 : index
    %165 = vector.load %arg9[%c4, %c0_63] : memref<5x10xf32, #tpu.memory_space<vmem>>, vector<1x10xf32>
    %166 = vector.shape_cast %165 : vector<1x10xf32> to vector<1x1x1x10xf32>
    %167 = vector.broadcast %166 : vector<1x1x1x10xf32> to vector<1x8x8x10xf32>
    %168 = arith.mulf %128, %167 : vector<1x8x8x10xf32>
    %cst_64 = arith.constant dense<0.000000e+00> : vector<1x8x8xf32>
    %169 = vector.multi_reduction <add>, %168, %cst_64 [3] : vector<1x8x8x10xf32> to vector<1x8x8xf32>
    %170 = vector.shape_cast %169 : vector<1x8x8xf32> to vector<1x8x8x1xf32>
    %cst_65 = arith.constant 0.000000e+00 : f32
    %171 = vector.broadcast %cst_65 : f32 to vector<1x2x8x1xf32>
    %172 = vector.extract_strided_slice %170 {offsets = [0, 2, 0, 0], sizes = [1, 6, 8, 1], strides = [1, 1, 1, 1]} : vector<1x8x8x1xf32> to vector<1x6x8x1xf32>
    %173 = tpu.concatenate %172, %171 in 1 : vector<1x6x8x1xf32>, vector<1x2x8x1xf32> -> vector<1x8x8x1xf32>
    %174 = arith.addf %164, %173 : vector<1x8x8x1xf32>
    %c0_66 = arith.constant 0 : index
    %175 = memref.load %arg10[%c0_66] : memref<1xf32, #tpu.memory_space<smem>>
    %176 = vector.broadcast %175 : f32 to vector<1x8x8x1xf32>
    %177 = arith.addf %174, %176 : vector<1x8x8x1xf32>
    %178 = arith.negf %177 : vector<1x8x8x1xf32>
    %179 = math.exp %178 : vector<1x8x8x1xf32>
    %cst_67 = arith.constant 1.000000e+00 : f32
    %180 = vector.broadcast %cst_67 : f32 to vector<1x8x8x1xf32>
    %181 = arith.addf %180, %179 : vector<1x8x8x1xf32>
    %182 = arith.divf %180, %181 : vector<1x8x8x1xf32>
    %183 = arith.negf %182 : vector<1x8x8x1xf32>
    %184 = math.exp %183 : vector<1x8x8x1xf32>
    %cst_68 = arith.constant 1.000000e+00 : f32
    %185 = vector.broadcast %cst_68 : f32 to vector<1x8x8x1xf32>
    %186 = arith.addf %185, %184 : vector<1x8x8x1xf32>
    %187 = arith.divf %185, %186 : vector<1x8x8x1xf32>
    %188 = vector.broadcast %187 : vector<1x8x8x1xf32> to vector<1x8x8x32xf32>
    %189 = arith.mulf %80, %188 : vector<1x8x8x32xf32>
    %190 = vector.shape_cast %13 : vector<64x32xf32> to vector<1x8x8x32xf32>
    %191 = arith.addf %189, %190 : vector<1x8x8x32xf32>
    %c0_69 = arith.constant 0 : index
    %c0_70 = arith.constant 0 : index
    %c0_71 = arith.constant 0 : index
    %c0_72 = arith.constant 0 : index
    %192 = vector.load %arg11[%c0_69, %c0_70, %c0_71, %c0_72] : memref<1x8x8x32xf32, #tpu.memory_space<vmem>>, vector<1x8x8x32xf32>
    tpu.vector_store %arg11[%c0_69, %c0_70, %c0_71, %c0_72], %191 {strides = array<i32>} : memref<1x8x8x32xf32, #tpu.memory_space<vmem>>, vector<1x8x8x32xf32>,
    return
  }
  func.func @transform_0(%arg0: i32) -> (i32, i32, i32, i32) {
    %c0_i32 = arith.constant 0 : i32
    %c0_i32_0 = arith.constant 0 : i32
    %c0_i32_1 = arith.constant 0 : i32
    %c0_i32_2 = arith.constant 0 : i32
    return %arg0, %c0_i32, %c0_i32_0, %c0_i32_1 : i32, i32, i32, i32
  }
  func.func @transform_1(%arg0: i32) -> (i32, i32) {
    %c0_i32 = arith.constant 0 : i32
    %c0_i32_0 = arith.constant 0 : i32
    %c0_i32_1 = arith.constant 0 : i32
    return %c0_i32, %c0_i32_0 : i32, i32
  }
  func.func @transform_2(%arg0: i32) -> (i32, i32) {
    %c0_i32 = arith.constant 0 : i32
    %c0_i32_0 = arith.constant 0 : i32
    %c0_i32_1 = arith.constant 0 : i32
    return %c0_i32, %c0_i32_0 : i32, i32
  }
  func.func @transform_3(%arg0: i32) -> (i32, i32, i32) {
    %c0_i32 = arith.constant 0 : i32
    %c0_i32_0 = arith.constant 0 : i32
    %c0_i32_1 = arith.constant 0 : i32
    %c0_i32_2 = arith.constant 0 : i32
    return %c0_i32, %c0_i32_0, %c0_i32_1 : i32, i32, i32
  }
  func.func @transform_4(%arg0: i32) -> (i32, i32) {
    %c0_i32 = arith.constant 0 : i32
    %c0_i32_0 = arith.constant 0 : i32
    %c0_i32_1 = arith.constant 0 : i32
    return %c0_i32, %c0_i32_0 : i32, i32
  }
  func.func @transform_5(%arg0: i32) -> (i32, i32) {
    %c0_i32 = arith.constant 0 : i32
    %c0_i32_0 = arith.constant 0 : i32
    %c0_i32_1 = arith.constant 0 : i32
    return %c0_i32, %c0_i32_0 : i32, i32
  }
  func.func @transform_6(%arg0: i32) -> (i32, i32) {
    %c0_i32 = arith.constant 0 : i32
    %c0_i32_0 = arith.constant 0 : i32
    %c0_i32_1 = arith.constant 0 : i32
    return %c0_i32, %c0_i32_0 : i32, i32
  }
  func.func @transform_7(%arg0: i32) -> (i32, i32) {
    %c0_i32 = arith.constant 0 : i32
    %c0_i32_0 = arith.constant 0 : i32
    %c0_i32_1 = arith.constant 0 : i32
    return %c0_i32, %c0_i32_0 : i32, i32
  }
  func.func @transform_8(%arg0: i32) -> (i32, i32) {
    %c0_i32 = arith.constant 0 : i32
    %c0_i32_0 = arith.constant 0 : i32
    %c0_i32_1 = arith.constant 0 : i32
    return %c0_i32, %c0_i32_0 : i32, i32
  }
  func.func @transform_9(%arg0: i32) -> i32 {
    %c0_i32 = arith.constant 0 : i32
    %c0_i32_0 = arith.constant 0 : i32
    return %c0_i32 : i32
  }
  func.func @transform_10(%arg0: i32) -> (i32, i32, i32, i32) {
    %c0_i32 = arith.constant 0 : i32
    %c0_i32_0 = arith.constant 0 : i32
    %c0_i32_1 = arith.constant 0 : i32
    %c0_i32_2 = arith.constant 0 : i32
    return %arg0, %c0_i32, %c0_i32_0, %c0_i32_1 : i32, i32, i32, i32
  }
}

</mosaic_0001>

<llo_original>
// kernel: tpu_custom_call.1
$region0: #{tpu_custom_call.1}
  #allocation0 [shape = 'u32[]', space=smem, size = 0x4, offset = 0x4, fixed_abs, tag = 'smem constant byte address 0x4 - core index']
  #allocation1 [shape = 'u32[144,128]{1,0:T(1,128)}', space=vmem, size = 0x12000, scoped, tag = 'internal scratch']
  #allocation2 [shape = 'f32[1]{0:T(128)S(6)}', space=smem, size = 0x200, scoped, tag = 'scoped memory for tpu_custom_call.1']
  %s0 = inlined_call_operand.hbm [shape: bf16[2,8,8,16], index: 0, kind: input, shape index: {}]
  %s1 = inlined_call_operand.hbm [shape: bf16[16,8], index: 1, kind: input, shape index: {}]
  %s2 = inlined_call_operand.hbm [shape: bf16[16,32], index: 2, kind: input, shape index: {}]
  %s3 = inlined_call_operand.hbm [shape: bf16[3,24,8], index: 3, kind: input, shape index: {}]
  %s4 = inlined_call_operand.hbm [shape: bf16[8,32], index: 4, kind: input, shape index: {}]
  %s5 = inlined_call_operand.hbm [shape: f32[2,16], index: 5, kind: input, shape index: {}]
  %s6 = inlined_call_operand.hbm [shape: f32[2,8], index: 6, kind: input, shape index: {}]
  %s7 = inlined_call_operand.hbm [shape: f32[2,8], index: 7, kind: input, shape index: {}]
  %s8 = inlined_call_operand.hbm [shape: f32[5,10], index: 8, kind: input, shape index: {}]
  %s9 = inlined_call_operand.<no memory space> [shape: f32[1], index: 9, kind: input, shape index: {}]
  %s10 = inlined_call_operand.hbm [shape: f32[2,8,8,32], index: 10, kind: output, shape index: {}]
  %s11 = sld [smem:[#allocation0]]
  $region109: #{tpu_custom_call.1} parent=0
    _
  %s13 = ssub.s32 1, %s11
  %s14 = scalar_select 0, %s13, %s11
  %15 = sst [smem:[#allocation2]] %s9
  $region1: #{tpu_custom_call.1} parent=0
    #allocation3 [shape = 'u8[32768]{0}', space=vmem, size = 0x8000, scoped, tag = 'input window, operand 0']
    #allocation4 [shape = 's32[2]{0}', space=sflag, size = 0x8, scoped, tag = 'scoped memory for tpu_custom_call.1']
    #allocation5 [shape = 's32[2]{0}', space=sflag, size = 0x8, scoped, tag = 'scoped memory for tpu_custom_call.1']
    #allocation6 [shape = 'u8[4096]{0}', space=vmem, size = 0x1000, scoped, tag = 'input window, operand 1, single buffered']
    #allocation7 [shape = 's32[1]{0}', space=sflag, size = 0x4, scoped, tag = 'scoped memory for tpu_custom_call.1']
    #allocation8 [shape = 'u8[4096]{0}', space=vmem, size = 0x1000, scoped, tag = 'input window, operand 2, single buffered']
    #allocation9 [shape = 'u8[18432]{0}', space=vmem, size = 0x4800, scoped, tag = 'input window, operand 3, single buffered']
    #allocation10 [shape = 's32[1]{0}', space=sflag, size = 0x4, scoped, tag = 'scoped memory for tpu_custom_call.1']
    #allocation11 [shape = 'u8[2048]{0}', space=vmem, size = 0x800, scoped, tag = 'input window, operand 4, single buffered']
    #allocation12 [shape = 'u8[1024]{0}', space=vmem, size = 0x400, scoped, tag = 'input window, operand 5, single buffered']
    #allocation13 [shape = 's32[1]{0}', space=sflag, size = 0x4, scoped, tag = 'scoped memory for tpu_custom_call.1']
    #allocation14 [shape = 'u8[1024]{0}', space=vmem, size = 0x400, scoped, tag = 'input window, operand 6, single buffered']
    #allocation15 [shape = 'u8[1024]{0}', space=vmem, size = 0x400, scoped, tag = 'input window, operand 7, single buffered']
    #allocation16 [shape = 's32[1]{0}', space=sflag, size = 0x4, scoped, tag = 'scoped memory for tpu_custom_call.1']
    #allocation17 [shape = 'u8[4096]{0}', space=vmem, size = 0x1000, scoped, tag = 'input window, operand 8, single buffered']
    #allocation18 [shape = 'u8[65536]{0}', space=vmem, size = 0x10000, scoped, tag = 'output window, operand 0']
    %16 = vsyncpa [#allocation4], 0
    %s17 = scalar_lea.sflag [#allocation4], 1
    %18 = vsyncpa %s17, 0
    %19 = vsyncpa [#allocation7], 0
    %20 = vsyncpa [#allocation10], 0
    %21 = vsyncpa [#allocation13], 0
    %22 = vsyncpa [#allocation16], 0
    %23 = vsyncpa [#allocation5], 0
    %s24 = scalar_lea.sflag [#allocation5], 1
    %25 = vsyncpa %s24, 0
    loop: start=0, step=1, limit=4
    $region2: #{tpu_custom_call.1} parent=1 // loop_pre_header
      _
    $region3: #{tpu_custom_call.1} parent=1 // loop_header
      %s27 = sphi 0, %s31
      %p28 = scmp.ge.s32.totalorder %s27, 4
      %s37 = sphi 0, %s39
      %s40 = sphi 0, %s37
      %s41 = sphi 0, %s40
      %s57 = sphi 0, %s41
      %s61 = sphi 0, %s61
      %s63 = sphi 0, %s61
      %s64 = sphi 0, %s63
      %s78 = sphi 0, %s64
      %s82 = sphi 0, %s82
      %s84 = sphi 0, %s82
      %s85 = sphi 0, %s84
      %s99 = sphi 0, %s85
      %s103 = sphi 0, %s103
      %s105 = sphi 0, %s103
      %s106 = sphi 0, %s105
      %s120 = sphi 0, %s106
      %s124 = sphi 0, %s124
      %s126 = sphi 0, %s124
      %s127 = sphi 0, %s126
      %s141 = sphi 0, %s127
      %s145 = sphi 0, %s145
      %s147 = sphi 0, %s145
      %s148 = sphi 0, %s147
      %s162 = sphi 0, %s148
      %s166 = sphi 0, %s166
      %s168 = sphi 0, %s166
      %s169 = sphi 0, %s168
      %s183 = sphi 0, %s169
      %s187 = sphi 0, %s187
      %s189 = sphi 0, %s187
      %s190 = sphi 0, %s189
      %s204 = sphi 0, %s190
      %s208 = sphi 0, %s208
      %s210 = sphi 0, %s208
      %s211 = sphi 0, %s210
      %s225 = sphi 0, %s211
      %s229 = sphi 0, %s229
      %s231 = sphi 0, %s229
      %s232 = sphi 0, %s231
      %s246 = sphi 0, %s232
      %s252 = sphi 0, %s254
      %s255 = sphi 0, %s252
      %s256 = sphi 0, %s255
      %s272 = sphi 0, %s256
    $region4: #{tpu_custom_call.1} parent=1 // loop_header_branch
      %30 = sbr.rel (%p28) target = $region8
    $region5: #{tpu_custom_call.1} parent=1 // loop_body
      %s32 = ssub.s32 %s27, 1
      %s33 = ssub.s32 %s27, 2
      %s34 = sadd.s32 %s27, 1
      %s35 = ssub.s32 %s27, %s34
      %p36 = scmp.eq.s32.totalorder %s35, 0
      %s38 = sadd.s32 %s37, 1
      %s39 = scalar_select %p36, %s37, %s38
      %p42 = pneg %p36
      %p43 = scmp.eq.s32.totalorder %s27, 1
      %p44 = por %p42, %p43
      %p45 = scmp.ne.s32.totalorder %s37, %s40
      %p46 = scmp.eq.s32.totalorder %s27, 0
      %p47 = por %p45, %p46
      %p48 = scmp.ne.s32.totalorder %s37, %s40
      %p49 = scmp.eq.s32.totalorder %s32, 1
      %p50 = por %p48, %p49
      %p51 = scmp.ne.s32.totalorder %s40, %s41
      %p52 = scmp.eq.s32.totalorder %s32, 0
      %p53 = por %p51, %p52
      %p54 = scmp.ne.s32.totalorder %s40, %s41
      %p55 = scmp.eq.s32.totalorder %s33, 1
      %p56 = por %p54, %p55
      %p58 = scmp.ne.s32.totalorder %s41, %s57
      %p59 = scmp.eq.s32.totalorder %s33, 0
      %p60 = por %p58, %p59
      %s62 = sadd.s32 %s61, 1
      %p65 = scmp.eq.s32.totalorder %s27, 1
      %p66 = scmp.ne.s32.totalorder %s61, %s63
      %p67 = scmp.eq.s32.totalorder %s27, 0
      %p68 = por %p66, %p67
      %p69 = scmp.ne.s32.totalorder %s61, %s63
      %p70 = scmp.eq.s32.totalorder %s32, 1
      %p71 = por %p69, %p70
      %p72 = scmp.ne.s32.totalorder %s63, %s64
      %p73 = scmp.eq.s32.totalorder %s32, 0
      %p74 = por %p72, %p73
      %p75 = scmp.ne.s32.totalorder %s63, %s64
      %p76 = scmp.eq.s32.totalorder %s33, 1
      %p77 = por %p75, %p76
      %p79 = scmp.ne.s32.totalorder %s64, %s78
      %p80 = scmp.eq.s32.totalorder %s33, 0
      %p81 = por %p79, %p80
      %s83 = sadd.s32 %s82, 1
      %p86 = scmp.eq.s32.totalorder %s27, 1
      %p87 = scmp.ne.s32.totalorder %s82, %s84
      %p88 = scmp.eq.s32.totalorder %s27, 0
      %p89 = por %p87, %p88
      %p90 = scmp.ne.s32.totalorder %s82, %s84
      %p91 = scmp.eq.s32.totalorder %s32, 1
      %p92 = por %p90, %p91
      %p93 = scmp.ne.s32.totalorder %s84, %s85
      %p94 = scmp.eq.s32.totalorder %s32, 0
      %p95 = por %p93, %p94
      %p96 = scmp.ne.s32.totalorder %s84, %s85
      %p97 = scmp.eq.s32.totalorder %s33, 1
      %p98 = por %p96, %p97
      %p100 = scmp.ne.s32.totalorder %s85, %s99
      %p101 = scmp.eq.s32.totalorder %s33, 0
      %p102 = por %p100, %p101
      %s104 = sadd.s32 %s103, 1
      %p107 = scmp.eq.s32.totalorder %s27, 1
      %p108 = scmp.ne.s32.totalorder %s103, %s105
      %p109 = scmp.eq.s32.totalorder %s27, 0
      %p110 = por %p108, %p109
      %p111 = scmp.ne.s32.totalorder %s103, %s105
      %p112 = scmp.eq.s32.totalorder %s32, 1
      %p113 = por %p111, %p112
      %p114 = scmp.ne.s32.totalorder %s105, %s106
      %p115 = scmp.eq.s32.totalorder %s32, 0
      %p116 = por %p114, %p115
      %p117 = scmp.ne.s32.totalorder %s105, %s106
      %p118 = scmp.eq.s32.totalorder %s33, 1
      %p119 = por %p117, %p118
      %p121 = scmp.ne.s32.totalorder %s106, %s120
      %p122 = scmp.eq.s32.totalorder %s33, 0
      %p123 = por %p121, %p122
      %s125 = sadd.s32 %s124, 1
      %p128 = scmp.eq.s32.totalorder %s27, 1
      %p129 = scmp.ne.s32.totalorder %s124, %s126
      %p130 = scmp.eq.s32.totalorder %s27, 0
      %p131 = por %p129, %p130
      %p132 = scmp.ne.s32.totalorder %s124, %s126
      %p133 = scmp.eq.s32.totalorder %s32, 1
      %p134 = por %p132, %p133
      %p135 = scmp.ne.s32.totalorder %s126, %s127
      %p136 = scmp.eq.s32.totalorder %s32, 0
      %p137 = por %p135, %p136
      %p138 = scmp.ne.s32.totalorder %s126, %s127
      %p139 = scmp.eq.s32.totalorder %s33, 1
      %p140 = por %p138, %p139
      %p142 = scmp.ne.s32.totalorder %s127, %s141
      %p143 = scmp.eq.s32.totalorder %s33, 0
      %p144 = por %p142, %p143
      %s146 = sadd.s32 %s145, 1
      %p149 = scmp.eq.s32.totalorder %s27, 1
      %p150 = scmp.ne.s32.totalorder %s145, %s147
      %p151 = scmp.eq.s32.totalorder %s27, 0
      %p152 = por %p150, %p151
      %p153 = scmp.ne.s32.totalorder %s145, %s147
      %p154 = scmp.eq.s32.totalorder %s32, 1
      %p155 = por %p153, %p154
      %p156 = scmp.ne.s32.totalorder %s147, %s148
      %p157 = scmp.eq.s32.totalorder %s32, 0
      %p158 = por %p156, %p157
      %p159 = scmp.ne.s32.totalorder %s147, %s148
      %p160 = scmp.eq.s32.totalorder %s33, 1
      %p161 = por %p159, %p160
      %p163 = scmp.ne.s32.totalorder %s148, %s162
      %p164 = scmp.eq.s32.totalorder %s33, 0
      %p165 = por %p163, %p164
      %s167 = sadd.s32 %s166, 1
      %p170 = scmp.eq.s32.totalorder %s27, 1
      %p171 = scmp.ne.s32.totalorder %s166, %s168
      %p172 = scmp.eq.s32.totalorder %s27, 0
      %p173 = por %p171, %p172
      %p174 = scmp.ne.s32.totalorder %s166, %s168
      %p175 = scmp.eq.s32.totalorder %s32, 1
      %p176 = por %p174, %p175
      %p177 = scmp.ne.s32.totalorder %s168, %s169
      %p178 = scmp.eq.s32.totalorder %s32, 0
      %p179 = por %p177, %p178
      %p180 = scmp.ne.s32.totalorder %s168, %s169
      %p181 = scmp.eq.s32.totalorder %s33, 1
      %p182 = por %p180, %p181
      %p184 = scmp.ne.s32.totalorder %s169, %s183
      %p185 = scmp.eq.s32.totalorder %s33, 0
      %p186 = por %p184, %p185
      %s188 = sadd.s32 %s187, 1
      %p191 = scmp.eq.s32.totalorder %s27, 1
      %p192 = scmp.ne.s32.totalorder %s187, %s189
      %p193 = scmp.eq.s32.totalorder %s27, 0
      %p194 = por %p192, %p193
      %p195 = scmp.ne.s32.totalorder %s187, %s189
      %p196 = scmp.eq.s32.totalorder %s32, 1
      %p197 = por %p195, %p196
      %p198 = scmp.ne.s32.totalorder %s189, %s190
      %p199 = scmp.eq.s32.totalorder %s32, 0
      %p200 = por %p198, %p199
      %p201 = scmp.ne.s32.totalorder %s189, %s190
      %p202 = scmp.eq.s32.totalorder %s33, 1
      %p203 = por %p201, %p202
      %p205 = scmp.ne.s32.totalorder %s190, %s204
      %p206 = scmp.eq.s32.totalorder %s33, 0
      %p207 = por %p205, %p206
      %s209 = sadd.s32 %s208, 1
      %p212 = scmp.eq.s32.totalorder %s27, 1
      %p213 = scmp.ne.s32.totalorder %s208, %s210
      %p214 = scmp.eq.s32.totalorder %s27, 0
      %p215 = por %p213, %p214
      %p216 = scmp.ne.s32.totalorder %s208, %s210
      %p217 = scmp.eq.s32.totalorder %s32, 1
      %p218 = por %p216, %p217
      %p219 = scmp.ne.s32.totalorder %s210, %s211
      %p220 = scmp.eq.s32.totalorder %s32, 0
      %p221 = por %p219, %p220
      %p222 = scmp.ne.s32.totalorder %s210, %s211
      %p223 = scmp.eq.s32.totalorder %s33, 1
      %p224 = por %p222, %p223
      %p226 = scmp.ne.s32.totalorder %s211, %s225
      %p227 = scmp.eq.s32.totalorder %s33, 0
      %p228 = por %p226, %p227
      %s230 = sadd.s32 %s229, 1
      %p233 = scmp.eq.s32.totalorder %s27, 1
      %p234 = scmp.ne.s32.totalorder %s229, %s231
      %p235 = scmp.eq.s32.totalorder %s27, 0
      %p236 = por %p234, %p235
      %p237 = scmp.ne.s32.totalorder %s229, %s231
      %p238 = scmp.eq.s32.totalorder %s32, 1
      %p239 = por %p237, %p238
      %p240 = scmp.ne.s32.totalorder %s231, %s232
      %p241 = scmp.eq.s32.totalorder %s32, 0
      %p242 = por %p240, %p241
      %p243 = scmp.ne.s32.totalorder %s231, %s232
      %p244 = scmp.eq.s32.totalorder %s33, 1
      %p245 = por %p243, %p244
      %p247 = scmp.ne.s32.totalorder %s232, %s246
      %p248 = scmp.eq.s32.totalorder %s33, 0
      %p249 = por %p247, %p248
      %s250 = ssub.s32 %s27, %s34
      %p251 = scmp.eq.s32.totalorder %s250, 0
      %s253 = sadd.s32 %s252, 1
      %s254 = scalar_select %p251, %s252, %s253
      %p257 = pneg %p251
      %p258 = scmp.eq.s32.totalorder %s27, 1
      %p259 = por %p257, %p258
      %p260 = scmp.ne.s32.totalorder %s252, %s255
      %p261 = scmp.eq.s32.totalorder %s27, 0
      %p262 = por %p260, %p261
      %p263 = scmp.ne.s32.totalorder %s252, %s255
      %p264 = scmp.eq.s32.totalorder %s32, 1
      %p265 = por %p263, %p264
      %p266 = scmp.ne.s32.totalorder %s255, %s256
      %p267 = scmp.eq.s32.totalorder %s32, 0
      %p268 = por %p266, %p267
      %p269 = scmp.ne.s32.totalorder %s255, %s256
      %p270 = scmp.eq.s32.totalorder %s33, 1
      %p271 = por %p269, %p270
      %p273 = scmp.ne.s32.totalorder %s256, %s272
      %p274 = scmp.eq.s32.totalorder %s33, 0
      %p275 = por %p273, %p274
      %p276 = scmp.le.s32.totalorder 1, %s27
      %p277 = scmp.lt.s32.totalorder %s27, 3
      %p278 = pnand %p276, %p277
      %p279 = pneg %p278
      // Predicated region
      $region9: #{tpu_custom_call.1} parent=5 // pred_check
        _
      $region10: #{tpu_custom_call.1} parent=5 // pred_check_branch
        %281 = sbr.rel (%p278) target = $region12
      $region11: #{tpu_custom_call.1} parent=5 // pred_region
        %s282 = ssub.s32 %s27, 1
        // Predicated region
        $region13: #{tpu_custom_call.1} parent=11 // pred_check
          %p283 = pneg %p74
        $region14: #{tpu_custom_call.1} parent=11 // pred_check_branch
          %285 = sbr.rel (%p283) target = $region16
        $region15: #{tpu_custom_call.1} parent=11 // pred_region
          %s287 = ssub.s32 128, 128
          %288 = vsyncadd [#allocation7], %s287
          %s289 = sshll.u32 [#allocation6], 4
          %s290 = int_to_ptr.vmem [resolvable:$true] %s289
          %295 = dma.hbm_to_vmem [thread:$0]  %s1, 128, %s290, [#allocation7], 64, 64, 4
        $region16: #{tpu_custom_call.1} parent=11 // pred_fallthru
          _
        // Predicated region
        $region17: #{tpu_custom_call.1} parent=11 // pred_check
          %p296 = pneg %p95
        $region18: #{tpu_custom_call.1} parent=11 // pred_check_branch
          %298 = sbr.rel (%p296) target = $region20
        $region19: #{tpu_custom_call.1} parent=11 // pred_region
          %s300 = ssub.s32 128, 128
          %301 = vsyncadd [#allocation7], %s300
          %s302 = sshll.u32 [#allocation8], 4
          %s303 = int_to_ptr.vmem [resolvable:$true] %s302
          %308 = dma.hbm_to_vmem [thread:$0]  %s2, 128, %s303, [#allocation7], 64, 64, 4
        $region20: #{tpu_custom_call.1} parent=11 // pred_fallthru
          _
        // Predicated region
        $region21: #{tpu_custom_call.1} parent=11 // pred_check
          %p309 = pneg %p116
        $region22: #{tpu_custom_call.1} parent=11 // pred_check_branch
          %311 = sbr.rel (%p309) target = $region24
        $region23: #{tpu_custom_call.1} parent=11 // pred_region
          %s313 = ssub.s32 576, 576
          %314 = vsyncadd [#allocation10], %s313
          %s315 = sshll.u32 [#allocation9], 4
          %s316 = int_to_ptr.vmem [resolvable:$true] %s315
          %321 = dma.hbm_to_vmem [thread:$0]  %s3, 576, %s316, [#allocation10], 64, 64, 4
        $region24: #{tpu_custom_call.1} parent=11 // pred_fallthru
          _
        // Predicated region
        $region25: #{tpu_custom_call.1} parent=11 // pred_check
          %p322 = pneg %p137
        $region26: #{tpu_custom_call.1} parent=11 // pred_check_branch
          %324 = sbr.rel (%p322) target = $region28
        $region27: #{tpu_custom_call.1} parent=11 // pred_region
          %s326 = ssub.s32 64, 64
          %327 = vsyncadd [#allocation10], %s326
          %s329 = sshll.u32 [#allocation11], 4
          %s330 = int_to_ptr.vmem [resolvable:$true] %s329
          %332 = dma.hbm_to_vmem [thread:$0]  %s4, 64, %s330, [#allocation10]
        $region28: #{tpu_custom_call.1} parent=11 // pred_fallthru
          _
        // Predicated region
        $region29: #{tpu_custom_call.1} parent=11 // pred_check
          %p333 = pneg %p158
        $region30: #{tpu_custom_call.1} parent=11 // pred_check_branch
          %335 = sbr.rel (%p333) target = $region32
        $region31: #{tpu_custom_call.1} parent=11 // pred_region
          %s337 = ssub.s32 32, 32
          %338 = vsyncadd [#allocation13], %s337
          %s340 = sshll.u32 [#allocation12], 4
          %s341 = int_to_ptr.vmem [resolvable:$true] %s340
          %343 = dma.hbm_to_vmem [thread:$0]  %s5, 32, %s341, [#allocation13]
        $region32: #{tpu_custom_call.1} parent=11 // pred_fallthru
          _
        // Predicated region
        $region33: #{tpu_custom_call.1} parent=11 // pred_check
          %p344 = pneg %p179
        $region34: #{tpu_custom_call.1} parent=11 // pred_check_branch
          %346 = sbr.rel (%p344) target = $region36
        $region35: #{tpu_custom_call.1} parent=11 // pred_region
          %s348 = ssub.s32 32, 32
          %349 = vsyncadd [#allocation13], %s348
          %s351 = sshll.u32 [#allocation14], 4
          %s352 = int_to_ptr.vmem [resolvable:$true] %s351
          %354 = dma.hbm_to_vmem [thread:$0]  %s6, 32, %s352, [#allocation13]
        $region36: #{tpu_custom_call.1} parent=11 // pred_fallthru
          _
        // Predicated region
        $region37: #{tpu_custom_call.1} parent=11 // pred_check
          %p355 = pneg %p200
        $region38: #{tpu_custom_call.1} parent=11 // pred_check_branch
          %357 = sbr.rel (%p355) target = $region40
        $region39: #{tpu_custom_call.1} parent=11 // pred_region
          %s359 = ssub.s32 32, 32
          %360 = vsyncadd [#allocation16], %s359
          %s362 = sshll.u32 [#allocation15], 4
          %s363 = int_to_ptr.vmem [resolvable:$true] %s362
          %365 = dma.hbm_to_vmem [thread:$0]  %s7, 32, %s363, [#allocation16]
        $region40: #{tpu_custom_call.1} parent=11 // pred_fallthru
          _
        // Predicated region
        $region41: #{tpu_custom_call.1} parent=11 // pred_check
          %p366 = pneg %p221
        $region42: #{tpu_custom_call.1} parent=11 // pred_check_branch
          %368 = sbr.rel (%p366) target = $region44
        $region43: #{tpu_custom_call.1} parent=11 // pred_region
          %s370 = ssub.s32 128, 128
          %371 = vsyncadd [#allocation16], %s370
          %s373 = sshll.u32 [#allocation17], 4
          %s374 = int_to_ptr.vmem [resolvable:$true] %s373
          %376 = dma.hbm_to_vmem [thread:$0]  %s8, 128, %s374, [#allocation16]
        $region44: #{tpu_custom_call.1} parent=11 // pred_fallthru
          _
        // Predicated region
        $region45: #{tpu_custom_call.1} parent=11 // pred_check
          %p377 = pneg %p242
        $region46: #{tpu_custom_call.1} parent=11 // pred_check_branch
          %379 = sbr.rel (%p377) target = $region48
        $region47: #{tpu_custom_call.1} parent=11 // pred_region
          _
        $region48: #{tpu_custom_call.1} parent=11 // pred_fallthru
          _
      $region12: #{tpu_custom_call.1} parent=5 // pred_fallthru
        _
      %p380 = scmp.lt.s32.totalorder %s27, 2
      // Predicated region
      $region49: #{tpu_custom_call.1} parent=5 // pred_check
        %p381 = pneg %p380
      $region50: #{tpu_custom_call.1} parent=5 // pred_check_branch
        %383 = sbr.rel (%p381) target = $region52
      $region51: #{tpu_custom_call.1} parent=5 // pred_region
        // Predicated region
        $region53: #{tpu_custom_call.1} parent=51 // pred_check
          %p384 = pneg %p47
        $region54: #{tpu_custom_call.1} parent=51 // pred_check_branch
          %386 = sbr.rel (%p384) target = $region56
        $region55: #{tpu_custom_call.1} parent=51 // pred_region
          %s387 = sand.u32 %s37, 1
          %s388 = scalar_lea.sflag [#allocation4], %s387
          %s389 = sand.u32 %s37, 1
          %s390 = smul.addr %s389, 32
          %s391 = scalar_lea.vmem [#allocation3], %s390
          %s393 = ssub.s32 512, 512
          %394 = vsyncadd %s388, %s393
          %s395 = smul.addr %s27, 8
          %s396 = smul.addr %s395, 64
          %s397 = scalar_lea.hbm %s0, %s396
          %s398 = sshll.u32 %s391, 4
          %s399 = int_to_ptr.vmem [resolvable:$true] %s398
          %404 = dma.hbm_to_vmem [thread:$0]  %s397, 512, %s399, %s388, 64, 64, 4
        $region56: #{tpu_custom_call.1} parent=51 // pred_fallthru
          _
      $region52: #{tpu_custom_call.1} parent=5 // pred_fallthru
        _
      %p405 = scmp.le.s32.totalorder 1, %s27
      %p406 = scmp.lt.s32.totalorder %s27, 3
      %p407 = pnand %p405, %p406
      %p408 = pneg %p407
      // Predicated region
      $region57: #{tpu_custom_call.1} parent=5 // pred_check
        _
      $region58: #{tpu_custom_call.1} parent=5 // pred_check_branch
        %410 = sbr.rel (%p407) target = $region60
      $region59: #{tpu_custom_call.1} parent=5 // pred_region
        %s411 = ssub.s32 %s27, 1
        %s412 = sand.u32 %s40, 1
        %s413 = scalar_lea.sflag [#allocation4], %s412
        %s414 = sand.u32 %s40, 1
        %s415 = smul.addr %s414, 32
        %s416 = scalar_lea.vmem [#allocation3], %s415
        // Predicated region
        $region61: #{tpu_custom_call.1} parent=59 // pred_check
          %p417 = pneg %p53
        $region62: #{tpu_custom_call.1} parent=59 // pred_check_branch
          %419 = sbr.rel (%p417) target = $region64
        $region63: #{tpu_custom_call.1} parent=59 // pred_region
          %420 = dma.done %s413, 512
        $region64: #{tpu_custom_call.1} parent=59 // pred_fallthru
          _
        // Predicated region
        $region65: #{tpu_custom_call.1} parent=59 // pred_check
          %p421 = pneg %p74
        $region66: #{tpu_custom_call.1} parent=59 // pred_check_branch
          %423 = sbr.rel (%p421) target = $region68
        $region67: #{tpu_custom_call.1} parent=59 // pred_region
          %424 = dma.done [#allocation7], 128
        $region68: #{tpu_custom_call.1} parent=59 // pred_fallthru
          _
        // Predicated region
        $region69: #{tpu_custom_call.1} parent=59 // pred_check
          %p425 = pneg %p95
        $region70: #{tpu_custom_call.1} parent=59 // pred_check_branch
          %427 = sbr.rel (%p425) target = $region72
        $region71: #{tpu_custom_call.1} parent=59 // pred_region
          %428 = dma.done [#allocation7], 128
        $region72: #{tpu_custom_call.1} parent=59 // pred_fallthru
          _
        // Predicated region
        $region73: #{tpu_custom_call.1} parent=59 // pred_check
          %p429 = pneg %p116
        $region74: #{tpu_custom_call.1} parent=59 // pred_check_branch
          %431 = sbr.rel (%p429) target = $region76
        $region75: #{tpu_custom_call.1} parent=59 // pred_region
          %432 = dma.done [#allocation10], 576
        $region76: #{tpu_custom_call.1} parent=59 // pred_fallthru
          _
        // Predicated region
        $region77: #{tpu_custom_call.1} parent=59 // pred_check
          %p433 = pneg %p137
        $region78: #{tpu_custom_call.1} parent=59 // pred_check_branch
          %435 = sbr.rel (%p433) target = $region80
        $region79: #{tpu_custom_call.1} parent=59 // pred_region
          %436 = dma.done [#allocation10], 64
        $region80: #{tpu_custom_call.1} parent=59 // pred_fallthru
          _
        // Predicated region
        $region81: #{tpu_custom_call.1} parent=59 // pred_check
          %p437 = pneg %p158
        $region82: #{tpu_custom_call.1} parent=59 // pred_check_branch
          %439 = sbr.rel (%p437) target = $region84
        $region83: #{tpu_custom_call.1} parent=59 // pred_region
          %440 = dma.done [#allocation13], 32
        $region84: #{tpu_custom_call.1} parent=59 // pred_fallthru
          _
        // Predicated region
        $region85: #{tpu_custom_call.1} parent=59 // pred_check
          %p441 = pneg %p179
        $region86: #{tpu_custom_call.1} parent=59 // pred_check_branch
          %443 = sbr.rel (%p441) target = $region88
        $region87: #{tpu_custom_call.1} parent=59 // pred_region
          %444 = dma.done [#allocation13], 32
        $region88: #{tpu_custom_call.1} parent=59 // pred_fallthru
          _
        // Predicated region
        $region89: #{tpu_custom_call.1} parent=59 // pred_check
          %p445 = pneg %p200
        $region90: #{tpu_custom_call.1} parent=59 // pred_check_branch
          %447 = sbr.rel (%p445) target = $region92
        $region91: #{tpu_custom_call.1} parent=59 // pred_region
          %448 = dma.done [#allocation16], 32
        $region92: #{tpu_custom_call.1} parent=59 // pred_fallthru
          _
        // Predicated region
        $region93: #{tpu_custom_call.1} parent=59 // pred_check
          %p449 = pneg %p221
        $region94: #{tpu_custom_call.1} parent=59 // pred_check_branch
          %451 = sbr.rel (%p449) target = $region96
        $region95: #{tpu_custom_call.1} parent=59 // pred_region
          %452 = dma.done [#allocation16], 128
        $region96: #{tpu_custom_call.1} parent=59 // pred_fallthru
          _
        %s453 = sand.u32 %s40, 1
        %s454 = scalar_lea.sflag [#allocation4], %s453
        %s455 = sand.u32 %s40, 1
        %s456 = smul.addr %s455, 32
        %s457 = scalar_lea.vmem [#allocation3], %s456
        %p458 = pneg %p53
        %p459 = pneg %p50
        %p460 = pneg %p74
        %p461 = pneg %p71
        %p462 = pneg %p95
        %p463 = pneg %p92
        %p464 = pneg %p116
        %p465 = pneg %p113
        %p466 = pneg %p137
        %p467 = pneg %p134
        %p468 = pneg %p158
        %p469 = pneg %p155
        %p470 = pneg %p179
        %p471 = pneg %p176
        %p472 = pneg %p200
        %p473 = pneg %p197
        %p474 = pneg %p221
        %p475 = pneg %p218
        %p476 = pneg %p242
        %p477 = pneg %p239
        %p478 = pneg %p268
        %p479 = pneg %p265
        %s480 = sand.u32 %s255, 1
        %s481 = scalar_lea.sflag [#allocation5], %s480
        %s482 = sand.u32 %s255, 1
        %s483 = smul.addr %s482, 64
        %s484 = scalar_lea.vmem [#allocation18], %s483
        %v486 = vld [vmem:[%s416] sm:$0xf]
        %v487 = vld [vmem:[%s416 + $0x4] sm:$0xf]
        %v488 = vld [vmem:[%s416 + $0x8] sm:$0xf]
        %v489 = vld [vmem:[%s416 + $0xc] sm:$0xf]
        %v490 = vld [vmem:[%s416 + $0x10] sm:$0xf]
        %v491 = vld [vmem:[%s416 + $0x14] sm:$0xf]
        %v492 = vld [vmem:[%s416 + $0x18] sm:$0xf]
        %v493 = vld [vmem:[%s416 + $0x1c] sm:$0xf]
        %v494 = vunpack.c.l.bf16 %v486
        %v495 = vunpack.c.l.bf16 %v487
        %v496 = vunpack.c.l.bf16 %v488
        %v497 = vunpack.c.l.bf16 %v489
        %v498 = vunpack.c.l.bf16 %v490
        %v499 = vunpack.c.l.bf16 %v491
        %v500 = vunpack.c.l.bf16 %v492
        %v501 = vunpack.c.l.bf16 %v493
        %v502 = vld [vmem:[#allocation12] sm:$0x1]
        %v503 = vlaneseq
        %v504 = vshrl.u32 %v503, 7
        %v505 = vsub.s32 0, %v504
        %v506 = vrot.slane %v502, %v505
        %v507 = vmul.f32 %v494, %v506
        %v508 = vmul.f32 %v495, %v506
        %v509 = vmul.f32 %v496, %v506
        %v510 = vmul.f32 %v497, %v506
        %v511 = vmul.f32 %v498, %v506
        %v512 = vmul.f32 %v499, %v506
        %v513 = vmul.f32 %v500, %v506
        %v514 = vmul.f32 %v501, %v506
        %v515 = vld [vmem:[#allocation12 + $0x1] sm:$0x1]
        %v516 = vlaneseq
        %v517 = vshrl.u32 %v516, 7
        %v518 = vsub.s32 0, %v517
        %v519 = vrot.slane %v515, %v518
        %v520 = vadd.f32 %v507, %v519
        %v521 = vadd.f32 %v508, %v519
        %v522 = vadd.f32 %v509, %v519
        %v523 = vadd.f32 %v510, %v519
        %v524 = vadd.f32 %v511, %v519
        %v525 = vadd.f32 %v512, %v519
        %v526 = vadd.f32 %v513, %v519
        %v527 = vadd.f32 %v514, %v519
        %v528 = vmax.f32 %v520, 0.0
        %v529 = vmax.f32 %v521, 0.0
        %v530 = vmax.f32 %v522, 0.0
        %v531 = vmax.f32 %v523, 0.0
        %v532 = vmax.f32 %v524, 0.0
        %v533 = vmax.f32 %v525, 0.0
        %v534 = vmax.f32 %v526, 0.0
        %v535 = vmax.f32 %v527, 0.0
        %v536 = vpack.c.bf16 %v529, %v528
        %v537 = vpack.c.bf16 %v531, %v530
        %v538 = vpack.c.bf16 %v533, %v532
        %v539 = vpack.c.bf16 %v535, %v534
        %v540 = vld [vmem:[#allocation8] sm:$0xf]
        %v541 = vld [vmem:[#allocation8 + $0x4] sm:$0xf]
        %v544 = vunpack.c.l.b16 %v540
        %v545 = vunpack.c.l.b16 %v541
        %v546 = vpack.c.b16 %v545, %v544
        %vm548 = vcmask 130048
        %v550 = vsel %vm548, %v536, 0
        %v553 = vsel %vm548, %v537, 0
        %v556 = vsel %vm548, %v538, 0
        %v559 = vsel %vm548, %v539, 0
        %561 = vmatprep.subr.bf16.mxu0 0
        %562 = vmatpush1.bf16.msra.mxu0 %v546
        %563 = vmatprep.subr.bf16.mxu0 0
        %564 = vmatpush1.bf16.msra.mxu0 0
        %565 = vmatprep.subr.bf16.mxu0 0
        %566 = vmatpush1.bf16.msra.mxu0 0
        %567 = vmatprep.subr.bf16.mxu0 0
        %568 = vmatpush1.bf16.msra.mxu0 0
        %569 = vmatprep.subr.bf16.mxu0 0
        %570 = vmatpush1.bf16.msra.mxu0 0
        %571 = vmatprep.subr.bf16.mxu0 0
        %572 = vmatpush1.bf16.msra.mxu0 0
        %573 = vmatprep.subr.bf16.mxu0 0
        %574 = vmatpush1.bf16.msra.mxu0 0
        %575 = vmatprep.subr.bf16.mxu0 0
        %576 = vmatpush1.bf16.msra.mxu0 0
        %577 = vmatprep.subr.bf16.mxu0 0
        %578 = vmatpush1.bf16.msra.mxu0 0
        %579 = vmatprep.subr.bf16.mxu0 0
        %580 = vmatpush1.bf16.msra.mxu0 0
        %581 = vmatprep.subr.bf16.mxu0 0
        %582 = vmatpush1.bf16.msra.mxu0 0
        %583 = vmatprep.subr.bf16.mxu0 0
        %584 = vmatpush1.bf16.msra.mxu0 0
        %585 = vmatprep.subr.bf16.mxu0 0
        %586 = vmatpush1.bf16.msra.mxu0 0
        %587 = vmatprep.subr.bf16.mxu0 0
        %588 = vmatpush1.bf16.msra.mxu0 0
        %589 = vmatprep.subr.bf16.mxu0 0
        %590 = vmatpush1.bf16.msra.mxu0 0
        %591 = vmatprep.subr.bf16.mxu0 0
        %592 = vmatpush1.bf16.msra.mxu0 0
        %593 = vmatprep.mubr.bf16.mxu0 0
        %594 = vmatmul.mubr.bf16.gmra.mrb[0].mxu0 %v550
        %v595 = vpop.f32.mrb[0].mxu0
        %v596 = vadd.f32 0.0, %v595
        %v597 = vpop.f32.mrb[0].mxu0
        %v598 = vpop.f32.mrb[0].mxu0
        %v599 = vadd.f32 0.0, %v598
        %v600 = vpop.f32.mrb[0].mxu0
        %601 = vmatprep.mubr.bf16.mxu0 0
        %602 = vmatmul.mubr.bf16.gmra.mrb[0].mxu0 %v553
        %v603 = vpop.f32.mrb[0].mxu0
        %v604 = vadd.f32 0.0, %v603
        %v605 = vpop.f32.mrb[0].mxu0
        %v606 = vpop.f32.mrb[0].mxu0
        %v607 = vadd.f32 0.0, %v606
        %v608 = vpop.f32.mrb[0].mxu0
        %609 = vmatprep.mubr.bf16.mxu0 0
        %610 = vmatmul.mubr.bf16.gmra.mrb[0].mxu0 %v556
        %v611 = vpop.f32.mrb[0].mxu0
        %v612 = vadd.f32 0.0, %v611
        %v613 = vpop.f32.mrb[0].mxu0
        %v614 = vpop.f32.mrb[0].mxu0
        %v615 = vadd.f32 0.0, %v614
        %v616 = vpop.f32.mrb[0].mxu0
        %617 = vmatprep.mubr.bf16.mxu0 0
        %618 = vmatmul.mubr.bf16.gmra.mrb[0].mxu0 %v559
        %v619 = vpop.f32.mrb[0].mxu0
        %v620 = vadd.f32 0.0, %v619
        %v621 = vpop.f32.mrb[0].mxu0
        %v622 = vpop.f32.mrb[0].mxu0
        %v623 = vadd.f32 0.0, %v622
        %v624 = vpop.f32.mrb[0].mxu0
        %625 = vdwg.mxu0
        %v626 = vld [vmem:[#allocation6] sm:$0xf]
        %v627 = vld [vmem:[#allocation6 + $0x4] sm:$0xf]
        %v630 = vunpack.c.l.b16 %v626
        %v631 = vunpack.c.l.b16 %v627
        %v632 = vpack.c.b16 %v631, %v630
        %634 = vmatprep.subr.bf16.mxu0 0
        %635 = vmatpush1.bf16.msra.mxu0 %v632
        %636 = vmatprep.subr.bf16.mxu0 0
        %637 = vmatpush1.bf16.msra.mxu0 0
        %638 = vmatprep.subr.bf16.mxu0 0
        %639 = vmatpush1.bf16.msra.mxu0 0
        %640 = vmatprep.subr.bf16.mxu0 0
        %641 = vmatpush1.bf16.msra.mxu0 0
        %642 = vmatprep.subr.bf16.mxu0 0
        %643 = vmatpush1.bf16.msra.mxu0 0
        %644 = vmatprep.subr.bf16.mxu0 0
        %645 = vmatpush1.bf16.msra.mxu0 0
        %646 = vmatprep.subr.bf16.mxu0 0
        %647 = vmatpush1.bf16.msra.mxu0 0
        %648 = vmatprep.subr.bf16.mxu0 0
        %649 = vmatpush1.bf16.msra.mxu0 0
        %650 = vmatprep.subr.bf16.mxu0 0
        %651 = vmatpush1.bf16.msra.mxu0 0
        %652 = vmatprep.subr.bf16.mxu0 0
        %653 = vmatpush1.bf16.msra.mxu0 0
        %654 = vmatprep.subr.bf16.mxu0 0
        %655 = vmatpush1.bf16.msra.mxu0 0
        %656 = vmatprep.subr.bf16.mxu0 0
        %657 = vmatpush1.bf16.msra.mxu0 0
        %658 = vmatprep.subr.bf16.mxu0 0
        %659 = vmatpush1.bf16.msra.mxu0 0
        %660 = vmatprep.subr.bf16.mxu0 0
        %661 = vmatpush1.bf16.msra.mxu0 0
        %662 = vmatprep.subr.bf16.mxu0 0
        %663 = vmatpush1.bf16.msra.mxu0 0
        %664 = vmatprep.subr.bf16.mxu0 0
        %665 = vmatpush1.bf16.msra.mxu0 0
        %666 = vmatprep.mubr.bf16.mxu0 0
        %667 = vmatmul.mubr.bf16.gmra.mrb[0].mxu0 %v550
        %v668 = vpop.f32.mrb[0].mxu0
        %v669 = vadd.f32 0.0, %v668
        %v670 = vpop.f32.mrb[0].mxu0
        %v671 = vpop.f32.mrb[0].mxu0
        %v672 = vadd.f32 0.0, %v671
        %v673 = vpop.f32.mrb[0].mxu0
        %674 = vmatprep.mubr.bf16.mxu0 0
        %675 = vmatmul.mubr.bf16.gmra.mrb[0].mxu0 %v553
        %v676 = vpop.f32.mrb[0].mxu0
        %v677 = vadd.f32 0.0, %v676
        %v678 = vpop.f32.mrb[0].mxu0
        %v679 = vpop.f32.mrb[0].mxu0
        %v680 = vadd.f32 0.0, %v679
        %v681 = vpop.f32.mrb[0].mxu0
        %682 = vmatprep.mubr.bf16.mxu0 0
        %683 = vmatmul.mubr.bf16.gmra.mrb[0].mxu0 %v556
        %v684 = vpop.f32.mrb[0].mxu0
        %v685 = vadd.f32 0.0, %v684
        %v686 = vpop.f32.mrb[0].mxu0
        %v687 = vpop.f32.mrb[0].mxu0
        %v688 = vadd.f32 0.0, %v687
        %v689 = vpop.f32.mrb[0].mxu0
        %690 = vmatprep.mubr.bf16.mxu0 0
        %691 = vmatmul.mubr.bf16.gmra.mrb[0].mxu0 %v559
        %v692 = vpop.f32.mrb[0].mxu0
        %v693 = vadd.f32 0.0, %v692
        %v694 = vpop.f32.mrb[0].mxu0
        %v695 = vpop.f32.mrb[0].mxu0
        %v696 = vadd.f32 0.0, %v695
        %v697 = vpop.f32.mrb[0].mxu0
        %698 = vdwg.mxu0
        %v699 = vld [vmem:[#allocation14] sm:$0x1]
        %v700 = vlaneseq
        %v701 = vshrl.u32 %v700, 7
        %v702 = vsub.s32 0, %v701
        %v703 = vrot.slane %v699, %v702
        %v704 = vmul.f32 %v669, %v703
        %v705 = vmul.f32 %v672, %v703
        %v706 = vmul.f32 %v677, %v703
        %v707 = vmul.f32 %v680, %v703
        %v708 = vmul.f32 %v685, %v703
        %v709 = vmul.f32 %v688, %v703
        %v710 = vmul.f32 %v693, %v703
        %v711 = vmul.f32 %v696, %v703
        %v712 = vld [vmem:[#allocation14 + $0x1] sm:$0x1]
        %v713 = vlaneseq
        %v714 = vshrl.u32 %v713, 7
        %v715 = vsub.s32 0, %v714
        %v716 = vrot.slane %v712, %v715
        %v717 = vadd.f32 %v704, %v716
        %v718 = vadd.f32 %v705, %v716
        %v719 = vadd.f32 %v706, %v716
        %v720 = vadd.f32 %v707, %v716
        %v721 = vadd.f32 %v708, %v716
        %v722 = vadd.f32 %v709, %v716
        %v723 = vadd.f32 %v710, %v716
        %v724 = vadd.f32 %v711, %v716
        %v725 = vmax.f32 %v717, 0.0
        %v726 = vmax.f32 %v718, 0.0
        %v727 = vmax.f32 %v719, 0.0
        %v728 = vmax.f32 %v720, 0.0
        %v729 = vmax.f32 %v721, 0.0
        %v730 = vmax.f32 %v722, 0.0
        %v731 = vmax.f32 %v723, 0.0
        %v732 = vmax.f32 %v724, 0.0
        %v733 = vpack.c.bf16 %v726, %v725
        %v734 = vpack.c.bf16 %v728, %v727
        %v735 = vpack.c.bf16 %v730, %v729
        %v736 = vpack.c.bf16 %v732, %v731
        %v741 = vunpack.c.l.b16 %v733
        %v742 = vunpack.c.h.b16 %v733
        %v743 = vunpack.c.l.b16 %v734
        %v744 = vunpack.c.h.b16 %v734
        %v745 = vunpack.c.l.b16 %v735
        %v746 = vunpack.c.h.b16 %v735
        %v747 = vunpack.c.l.b16 %v736
        %v748 = vunpack.c.h.b16 %v736
        %v749 = vpack.c.b16 %v741, %v741
        %v750 = vpack.c.b16 %v742, %v742
        %v751 = vpack.c.b16 %v743, %v743
        %v752 = vpack.c.b16 %v744, %v744
        %v753 = vpack.c.b16 %v745, %v745
        %v754 = vpack.c.b16 %v746, %v746
        %v755 = vpack.c.b16 %v747, %v747
        %v756 = vpack.c.b16 %v748, %v748
        %v758 = vshrl.u32 %v749, 16
        %v760 = vrot.slane %v758, 3
        %v762 = vshrl.u32 %v750, 16
        %v764 = vrot.slane %v762, 3
        %v766 = vshrl.u32 %v751, 16
        %v768 = vrot.slane %v766, 3
        %v770 = vshrl.u32 %v752, 16
        %v772 = vrot.slane %v770, 3
        %v774 = vshrl.u32 %v753, 16
        %v776 = vrot.slane %v774, 3
        %v778 = vshrl.u32 %v754, 16
        %v780 = vrot.slane %v778, 3
        %v782 = vshrl.u32 %v755, 16
        %v784 = vrot.slane %v782, 3
        %v786 = vshrl.u32 %v756, 16
        %v788 = vrot.slane %v786, 3
        %v797 = vrot.slane %v758, 7
        %v798 = vshll.u32 %v749, 16
        %v800 = vor.u32 %v797, %v798
        %v801 = vrot.slane %v762, 7
        %v802 = vshll.u32 %v750, 16
        %v804 = vor.u32 %v801, %v802
        %v805 = vrot.slane %v766, 7
        %v806 = vshll.u32 %v751, 16
        %v808 = vor.u32 %v805, %v806
        %v809 = vrot.slane %v770, 7
        %v810 = vshll.u32 %v752, 16
        %v812 = vor.u32 %v809, %v810
        %v813 = vrot.slane %v774, 7
        %v814 = vshll.u32 %v753, 16
        %v816 = vor.u32 %v813, %v814
        %v817 = vrot.slane %v778, 7
        %v818 = vshll.u32 %v754, 16
        %v820 = vor.u32 %v817, %v818
        %v821 = vrot.slane %v782, 7
        %v822 = vshll.u32 %v755, 16
        %v824 = vor.u32 %v821, %v822
        %v825 = vrot.slane %v786, 7
        %v826 = vshll.u32 %v756, 16
        %v828 = vor.u32 %v825, %v826
        %vm837 = vcmask 1040384
        %vm838 = vsmask.f32 256
        %vm839 = vmand %vm837, %vm838
        %v840 = vsel %vm839, %v760, %v800
        %v841 = vsel %vm839, %v764, %v804
        %v842 = vsel %vm839, %v768, %v808
        %v843 = vsel %vm839, %v772, %v812
        %v844 = vsel %vm839, %v776, %v816
        %v845 = vsel %vm839, %v780, %v820
        %v846 = vsel %vm839, %v784, %v824
        %v847 = vsel %vm839, %v788, %v828
        %v848 = vlaneseq
        %v849 = vshrl.u32 %v848, 7
        %vm850 = vcmp.ge.s32.totalorder %v849, 1
        %v851 = vsel %vm850, 1, 0
        %vm852 = vcmp.eq.s32.totalorder %v851, 1
        %vm853 = vmpackc.low %vm852, %vm852
        %v854 = vsel %vm853, %v840, 0
        %v855 = vsel %vm853, %v841, 0
        %v856 = vsel %vm853, %v842, 0
        %v857 = vsel %vm853, %v843, 0
        %v858 = vsel %vm853, %v844, 0
        %v859 = vsel %vm853, %v845, 0
        %v860 = vsel %vm853, %v846, 0
        %v861 = vsel %vm853, %v847, 0
        %v862 = vrot.slane %v798, 1
        %v863 = vor.u32 %v758, %v862
        %v864 = vrot.slane %v802, 1
        %v865 = vor.u32 %v762, %v864
        %v866 = vrot.slane %v806, 1
        %v867 = vor.u32 %v766, %v866
        %v868 = vrot.slane %v810, 1
        %v869 = vor.u32 %v770, %v868
        %v870 = vrot.slane %v814, 1
        %v871 = vor.u32 %v774, %v870
        %v872 = vrot.slane %v818, 1
        %v873 = vor.u32 %v778, %v872
        %v874 = vrot.slane %v822, 1
        %v875 = vor.u32 %v782, %v874
        %v876 = vrot.slane %v826, 1
        %v877 = vor.u32 %v786, %v876
        %v886 = vrot.slane %v798, 5
        %v887 = vrot.slane %v802, 5
        %v888 = vrot.slane %v806, 5
        %v889 = vrot.slane %v810, 5
        %v890 = vrot.slane %v814, 5
        %v891 = vrot.slane %v818, 5
        %v892 = vrot.slane %v822, 5
        %v893 = vrot.slane %v826, 5
        %vm902 = vcmask 1043456
        %vm903 = vsmask.f32 3328
        %vm904 = vmand %vm902, %vm903
        %v905 = vsel %vm904, %v863, %v886
        %v906 = vsel %vm904, %v865, %v887
        %v907 = vsel %vm904, %v867, %v888
        %v908 = vsel %vm904, %v869, %v889
        %v909 = vsel %vm904, %v871, %v890
        %v910 = vsel %vm904, %v873, %v891
        %v911 = vsel %vm904, %v875, %v892
        %v912 = vsel %vm904, %v877, %v893
        %vm913 = vcmp.lt.s32.totalorder %v849, 7
        %v914 = vsel %vm913, 1, 0
        %vm915 = vcmp.eq.s32.totalorder %v914, 1
        %vm916 = vmpackc.low %vm915, %vm915
        %v917 = vsel %vm916, %v905, 0
        %v918 = vsel %vm916, %v906, 0
        %v919 = vsel %vm916, %v907, 0
        %v920 = vsel %vm916, %v908, 0
        %v921 = vsel %vm916, %v909, 0
        %v922 = vsel %vm916, %v910, 0
        %v923 = vsel %vm916, %v911, 0
        %v924 = vsel %vm916, %v912, 0
        %925 = vrot.lane.b32.xlu0 %v749, 8
        %v926 = vpop.permute.xlu0 %925
        %927 = vrot.lane.b32.xlu0 %v750, 8
        %v928 = vpop.permute.xlu0 %927
        %929 = vrot.lane.b32.xlu0 %v751, 8
        %v930 = vpop.permute.xlu0 %929
        %931 = vrot.lane.b32.xlu0 %v752, 8
        %v932 = vpop.permute.xlu0 %931
        %933 = vrot.lane.b32.xlu0 %v753, 8
        %v934 = vpop.permute.xlu0 %933
        %935 = vrot.lane.b32.xlu0 %v754, 8
        %v936 = vpop.permute.xlu0 %935
        %937 = vrot.lane.b32.xlu0 %v755, 8
        %v938 = vpop.permute.xlu0 %937
        %939 = vrot.lane.b32.xlu0 %v756, 8
        %v940 = vpop.permute.xlu0 %939
        %949 = vrot.lane.b32.xlu0 %v917, 16
        %v950 = vpop.permute.xlu0 %949
        %951 = vrot.lane.b32.xlu0 %v918, 16
        %v952 = vpop.permute.xlu0 %951
        %953 = vrot.lane.b32.xlu0 %v919, 16
        %v954 = vpop.permute.xlu0 %953
        %955 = vrot.lane.b32.xlu0 %v920, 16
        %v956 = vpop.permute.xlu0 %955
        %957 = vrot.lane.b32.xlu0 %v921, 16
        %v958 = vpop.permute.xlu0 %957
        %959 = vrot.lane.b32.xlu0 %v922, 16
        %v960 = vpop.permute.xlu0 %959
        %961 = vrot.lane.b32.xlu0 %v923, 16
        %v962 = vpop.permute.xlu0 %961
        %963 = vrot.lane.b32.xlu0 %v924, 16
        %v964 = vpop.permute.xlu0 %963
        %vm965 = vcmask 64512
        %v968 = vsel %vm965, %v854, %v926
        %v971 = vsel %vm965, %v855, %v928
        %v974 = vsel %vm965, %v856, %v930
        %v977 = vsel %vm965, %v857, %v932
        %v980 = vsel %vm965, %v858, %v934
        %v983 = vsel %vm965, %v859, %v936
        %v986 = vsel %vm965, %v860, %v938
        %v989 = vsel %vm965, %v861, %v940
        %v991 = vsel %vm548, %v968, %v950
        %v993 = vsel %vm548, %v971, %v952
        %v995 = vsel %vm548, %v974, %v954
        %v997 = vsel %vm548, %v977, %v956
        %v999 = vsel %vm548, %v980, %v958
        %v1001 = vsel %vm548, %v983, %v960
        %v1003 = vsel %vm548, %v986, %v962
        %v1005 = vsel %vm548, %v989, %v964
        %v1006 = vld [vmem:[#allocation9] sm:$0xf]
        %v1007 = vld [vmem:[#allocation9 + $0x4] sm:$0xf]
        %v1008 = vld [vmem:[#allocation9 + $0x8] sm:$0xf]
        %v1017 = vunpack.c.l.b16 %v991
        %v1018 = vunpack.c.l.b16 %v993
        %v1019 = vunpack.c.l.b16 %v995
        %v1020 = vunpack.c.l.b16 %v997
        %v1021 = vunpack.c.l.b16 %v999
        %v1022 = vunpack.c.l.b16 %v1001
        %v1023 = vunpack.c.l.b16 %v1003
        %v1024 = vunpack.c.l.b16 %v1005
        %v1025 = vpack.c.b16 %v1018, %v1017
        %v1026 = vpack.c.b16 %v1020, %v1019
        %v1027 = vpack.c.b16 %v1022, %v1021
        %v1028 = vpack.c.b16 %v1024, %v1023
        %v1032 = vunpack.c.l.b16 %v1006
        %v1033 = vunpack.c.l.b16 %v1007
        %v1034 = vunpack.c.l.b16 %v1008
        %v1035 = vpack.c.b16 %v1033, %v1032
        %v1036 = vpack.c.b16 %v1034, %v1034
        %vm1038 = vcmask 195584
        %v1040 = vsel %vm1038, %v1025, 0
        %v1043 = vsel %vm1038, %v1026, 0
        %v1046 = vsel %vm1038, %v1027, 0
        %v1049 = vsel %vm1038, %v1028, 0
        %vm1051 = vcmask 1043456
        %v1053 = vsel %vm1051, %v1036, 0
        %1055 = vmatprep.subr.bf16.mxu0 0
        %1056 = vmatpush1.bf16.msra.mxu0 %v1035
        %1057 = vmatprep.subr.bf16.mxu0 0
        %1058 = vmatpush1.bf16.msra.mxu0 %v1053
        %1059 = vmatprep.subr.bf16.mxu0 0
        %1060 = vmatpush1.bf16.msra.mxu0 0
        %1061 = vmatprep.subr.bf16.mxu0 0
        %1062 = vmatpush1.bf16.msra.mxu0 0
        %1063 = vmatprep.subr.bf16.mxu0 0
        %1064 = vmatpush1.bf16.msra.mxu0 0
        %1065 = vmatprep.subr.bf16.mxu0 0
        %1066 = vmatpush1.bf16.msra.mxu0 0
        %1067 = vmatprep.subr.bf16.mxu0 0
        %1068 = vmatpush1.bf16.msra.mxu0 0
        %1069 = vmatprep.subr.bf16.mxu0 0
        %1070 = vmatpush1.bf16.msra.mxu0 0
        %1071 = vmatprep.subr.bf16.mxu0 0
        %1072 = vmatpush1.bf16.msra.mxu0 0
        %1073 = vmatprep.subr.bf16.mxu0 0
        %1074 = vmatpush1.bf16.msra.mxu0 0
        %1075 = vmatprep.subr.bf16.mxu0 0
        %1076 = vmatpush1.bf16.msra.mxu0 0
        %1077 = vmatprep.subr.bf16.mxu0 0
        %1078 = vmatpush1.bf16.msra.mxu0 0
        %1079 = vmatprep.subr.bf16.mxu0 0
        %1080 = vmatpush1.bf16.msra.mxu0 0
        %1081 = vmatprep.subr.bf16.mxu0 0
        %1082 = vmatpush1.bf16.msra.mxu0 0
        %1083 = vmatprep.subr.bf16.mxu0 0
        %1084 = vmatpush1.bf16.msra.mxu0 0
        %1085 = vmatprep.subr.bf16.mxu0 0
        %1086 = vmatpush1.bf16.msra.mxu0 0
        %1087 = vmatprep.mubr.bf16.mxu0 0
        %1088 = vmatmul.mubr.bf16.gmra.mrb[0].mxu0 %v1040
        %v1089 = vpop.f32.mrb[0].mxu0
        %v1090 = vadd.f32 0.0, %v1089
        %v1091 = vpop.f32.mrb[0].mxu0
        %v1092 = vpop.f32.mrb[0].mxu0
        %v1093 = vadd.f32 0.0, %v1092
        %v1094 = vpop.f32.mrb[0].mxu0
        %1095 = vmatprep.mubr.bf16.mxu0 0
        %1096 = vmatmul.mubr.bf16.gmra.mrb[0].mxu0 %v1043
        %v1097 = vpop.f32.mrb[0].mxu0
        %v1098 = vadd.f32 0.0, %v1097
        %v1099 = vpop.f32.mrb[0].mxu0
        %v1100 = vpop.f32.mrb[0].mxu0
        %v1101 = vadd.f32 0.0, %v1100
        %v1102 = vpop.f32.mrb[0].mxu0
        %1103 = vmatprep.mubr.bf16.mxu0 0
        %1104 = vmatmul.mubr.bf16.gmra.mrb[0].mxu0 %v1046
        %v1105 = vpop.f32.mrb[0].mxu0
        %v1106 = vadd.f32 0.0, %v1105
        %v1107 = vpop.f32.mrb[0].mxu0
        %v1108 = vpop.f32.mrb[0].mxu0
        %v1109 = vadd.f32 0.0, %v1108
        %v1110 = vpop.f32.mrb[0].mxu0
        %1111 = vmatprep.mubr.bf16.mxu0 0
        %1112 = vmatmul.mubr.bf16.gmra.mrb[0].mxu0 %v1049
        %v1113 = vpop.f32.mrb[0].mxu0
        %v1114 = vadd.f32 0.0, %v1113
        %v1115 = vpop.f32.mrb[0].mxu0
        %v1116 = vpop.f32.mrb[0].mxu0
        %v1117 = vpop.f32.mrb[0].mxu0
        %1118 = vdwg.mxu0
        %s1119 = scalar_lea.vmem [#allocation9], 12
        %v1120 = vld [vmem:[%s1119] sm:$0xf]
        %v1121 = vld [vmem:[%s1119 + $0x4] sm:$0xf]
        %v1122 = vld [vmem:[%s1119 + $0x8] sm:$0xf]
        %v1126 = vunpack.c.l.b16 %v1120
        %v1127 = vunpack.c.l.b16 %v1121
        %v1128 = vunpack.c.l.b16 %v1122
        %v1129 = vpack.c.b16 %v1127, %v1126
        %v1130 = vpack.c.b16 %v1128, %v1128
        %v1133 = vsel %vm1051, %v1130, 0
        %1135 = vmatprep.subr.bf16.mxu0 0
        %1136 = vmatpush1.bf16.msra.mxu0 %v1129
        %1137 = vmatprep.subr.bf16.mxu0 0
        %1138 = vmatpush1.bf16.msra.mxu0 %v1133
        %1139 = vmatprep.subr.bf16.mxu0 0
        %1140 = vmatpush1.bf16.msra.mxu0 0
        %1141 = vmatprep.subr.bf16.mxu0 0
        %1142 = vmatpush1.bf16.msra.mxu0 0
        %1143 = vmatprep.subr.bf16.mxu0 0
        %1144 = vmatpush1.bf16.msra.mxu0 0
        %1145 = vmatprep.subr.bf16.mxu0 0
        %1146 = vmatpush1.bf16.msra.mxu0 0
        %1147 = vmatprep.subr.bf16.mxu0 0
        %1148 = vmatpush1.bf16.msra.mxu0 0
        %1149 = vmatprep.subr.bf16.mxu0 0
        %1150 = vmatpush1.bf16.msra.mxu0 0
        %1151 = vmatprep.subr.bf16.mxu0 0
        %1152 = vmatpush1.bf16.msra.mxu0 0
        %1153 = vmatprep.subr.bf16.mxu0 0
        %1154 = vmatpush1.bf16.msra.mxu0 0
        %1155 = vmatprep.subr.bf16.mxu0 0
        %1156 = vmatpush1.bf16.msra.mxu0 0
        %1157 = vmatprep.subr.bf16.mxu0 0
        %1158 = vmatpush1.bf16.msra.mxu0 0
        %1159 = vmatprep.subr.bf16.mxu0 0
        %1160 = vmatpush1.bf16.msra.mxu0 0
        %1161 = vmatprep.subr.bf16.mxu0 0
        %1162 = vmatpush1.bf16.msra.mxu0 0
        %1163 = vmatprep.subr.bf16.mxu0 0
        %1164 = vmatpush1.bf16.msra.mxu0 0
        %1165 = vmatprep.subr.bf16.mxu0 0
        %1166 = vmatpush1.bf16.msra.mxu0 0
        %1167 = vmatprep.mubr.bf16.mxu0 0
        %1168 = vmatmul.mubr.bf16.gmra.mrb[0].mxu0 %v1040
        %v1169 = vpop.f32.mrb[0].mxu0
        %v1170 = vadd.f32 0.0, %v1169
        %v1171 = vpop.f32.mrb[0].mxu0
        %v1172 = vpop.f32.mrb[0].mxu0
        %v1173 = vadd.f32 0.0, %v1172
        %v1174 = vpop.f32.mrb[0].mxu0
        %1175 = vmatprep.mubr.bf16.mxu0 0
        %1176 = vmatmul.mubr.bf16.gmra.mrb[0].mxu0 %v1043
        %v1177 = vpop.f32.mrb[0].mxu0
        %v1178 = vadd.f32 0.0, %v1177
        %v1179 = vpop.f32.mrb[0].mxu0
        %v1180 = vpop.f32.mrb[0].mxu0
        %v1181 = vadd.f32 0.0, %v1180
        %v1182 = vpop.f32.mrb[0].mxu0
        %1183 = vmatprep.mubr.bf16.mxu0 0
        %1184 = vmatmul.mubr.bf16.gmra.mrb[0].mxu0 %v1046
        %v1185 = vpop.f32.mrb[0].mxu0
        %v1186 = vadd.f32 0.0, %v1185
        %v1187 = vpop.f32.mrb[0].mxu0
        %v1188 = vpop.f32.mrb[0].mxu0
        %v1189 = vadd.f32 0.0, %v1188
        %v1190 = vpop.f32.mrb[0].mxu0
        %1191 = vmatprep.mubr.bf16.mxu0 0
        %1192 = vmatmul.mubr.bf16.gmra.mrb[0].mxu0 %v1049
        %v1193 = vpop.f32.mrb[0].mxu0
        %v1194 = vadd.f32 0.0, %v1193
        %v1195 = vpop.f32.mrb[0].mxu0
        %v1196 = vpop.f32.mrb[0].mxu0
        %v1197 = vadd.f32 0.0, %v1196
        %v1198 = vpop.f32.mrb[0].mxu0
        %1199 = vdwg.mxu0
        %v1200 = vadd.f32 %v1170, 0.0
        %v1201 = vadd.f32 %v1090, %v1173
        %v1202 = vadd.f32 %v1093, %v1178
        %v1203 = vadd.f32 %v1098, %v1181
        %v1204 = vadd.f32 %v1101, %v1186
        %v1205 = vadd.f32 %v1106, %v1189
        %v1206 = vadd.f32 %v1109, %v1194
        %v1207 = vadd.f32 %v1114, %v1197
        %s1208 = scalar_lea.vmem [#allocation9], 24
        %v1209 = vld [vmem:[%s1208] sm:$0xf]
        %v1210 = vld [vmem:[%s1208 + $0x4] sm:$0xf]
        %v1211 = vld [vmem:[%s1208 + $0x8] sm:$0xf]
        %v1215 = vunpack.c.l.b16 %v1209
        %v1216 = vunpack.c.l.b16 %v1210
        %v1217 = vunpack.c.l.b16 %v1211
        %v1218 = vpack.c.b16 %v1216, %v1215
        %v1219 = vpack.c.b16 %v1217, %v1217
        %v1222 = vsel %vm1051, %v1219, 0
        %1224 = vmatprep.subr.bf16.mxu0 0
        %1225 = vmatpush1.bf16.msra.mxu0 %v1218
        %1226 = vmatprep.subr.bf16.mxu0 0
        %1227 = vmatpush1.bf16.msra.mxu0 %v1222
        %1228 = vmatprep.subr.bf16.mxu0 0
        %1229 = vmatpush1.bf16.msra.mxu0 0
        %1230 = vmatprep.subr.bf16.mxu0 0
        %1231 = vmatpush1.bf16.msra.mxu0 0
        %1232 = vmatprep.subr.bf16.mxu0 0
        %1233 = vmatpush1.bf16.msra.mxu0 0
        %1234 = vmatprep.subr.bf16.mxu0 0
        %1235 = vmatpush1.bf16.msra.mxu0 0
        %1236 = vmatprep.subr.bf16.mxu0 0
        %1237 = vmatpush1.bf16.msra.mxu0 0
        %1238 = vmatprep.subr.bf16.mxu0 0
        %1239 = vmatpush1.bf16.msra.mxu0 0
        %1240 = vmatprep.subr.bf16.mxu0 0
        %1241 = vmatpush1.bf16.msra.mxu0 0
        %1242 = vmatprep.subr.bf16.mxu0 0
        %1243 = vmatpush1.bf16.msra.mxu0 0
        %1244 = vmatprep.subr.bf16.mxu0 0
        %1245 = vmatpush1.bf16.msra.mxu0 0
        %1246 = vmatprep.subr.bf16.mxu0 0
        %1247 = vmatpush1.bf16.msra.mxu0 0
        %1248 = vmatprep.subr.bf16.mxu0 0
        %1249 = vmatpush1.bf16.msra.mxu0 0
        %1250 = vmatprep.subr.bf16.mxu0 0
        %1251 = vmatpush1.bf16.msra.mxu0 0
        %1252 = vmatprep.subr.bf16.mxu0 0
        %1253 = vmatpush1.bf16.msra.mxu0 0
        %1254 = vmatprep.subr.bf16.mxu0 0
        %1255 = vmatpush1.bf16.msra.mxu0 0
        %1256 = vmatprep.mubr.bf16.mxu0 0
        %1257 = vmatmul.mubr.bf16.gmra.mrb[0].mxu0 %v1040
        %v1258 = vpop.f32.mrb[0].mxu0
        %v1259 = vpop.f32.mrb[0].mxu0
        %v1260 = vpop.f32.mrb[0].mxu0
        %v1261 = vadd.f32 0.0, %v1260
        %v1262 = vpop.f32.mrb[0].mxu0
        %1263 = vmatprep.mubr.bf16.mxu0 0
        %1264 = vmatmul.mubr.bf16.gmra.mrb[0].mxu0 %v1043
        %v1265 = vpop.f32.mrb[0].mxu0
        %v1266 = vadd.f32 0.0, %v1265
        %v1267 = vpop.f32.mrb[0].mxu0
        %v1268 = vpop.f32.mrb[0].mxu0
        %v1269 = vadd.f32 0.0, %v1268
        %v1270 = vpop.f32.mrb[0].mxu0
        %1271 = vmatprep.mubr.bf16.mxu0 0
        %1272 = vmatmul.mubr.bf16.gmra.mrb[0].mxu0 %v1046
        %v1273 = vpop.f32.mrb[0].mxu0
        %v1274 = vadd.f32 0.0, %v1273
        %v1275 = vpop.f32.mrb[0].mxu0
        %v1276 = vpop.f32.mrb[0].mxu0
        %v1277 = vadd.f32 0.0, %v1276
        %v1278 = vpop.f32.mrb[0].mxu0
        %1279 = vmatprep.mubr.bf16.mxu0 0
        %1280 = vmatmul.mubr.bf16.gmra.mrb[0].mxu0 %v1049
        %v1281 = vpop.f32.mrb[0].mxu0
        %v1282 = vadd.f32 0.0, %v1281
        %v1283 = vpop.f32.mrb[0].mxu0
        %v1284 = vpop.f32.mrb[0].mxu0
        %v1285 = vadd.f32 0.0, %v1284
        %v1286 = vpop.f32.mrb[0].mxu0
        %1287 = vdwg.mxu0
        %v1288 = vadd.f32 %v1200, %v1261
        %v1289 = vadd.f32 %v1201, %v1266
        %v1290 = vadd.f32 %v1202, %v1269
        %v1291 = vadd.f32 %v1203, %v1274
        %v1292 = vadd.f32 %v1204, %v1277
        %v1293 = vadd.f32 %v1205, %v1282
        %v1294 = vadd.f32 %v1206, %v1285
        %v1295 = vadd.f32 %v1207, 0.0
        %v1296 = vld [vmem:[#allocation15] sm:$0x1]
        %v1297 = vlaneseq
        %v1298 = vshrl.u32 %v1297, 7
        %v1299 = vsub.s32 0, %v1298
        %v1300 = vrot.slane %v1296, %v1299
        %v1301 = vmul.f32 %v1288, %v1300
        %v1302 = vmul.f32 %v1289, %v1300
        %v1303 = vmul.f32 %v1290, %v1300
        %v1304 = vmul.f32 %v1291, %v1300
        %v1305 = vmul.f32 %v1292, %v1300
        %v1306 = vmul.f32 %v1293, %v1300
        %v1307 = vmul.f32 %v1294, %v1300
        %v1308 = vmul.f32 %v1295, %v1300
        %v1309 = vld [vmem:[#allocation15 + $0x1] sm:$0x1]
        %v1310 = vlaneseq
        %v1311 = vshrl.u32 %v1310, 7
        %v1312 = vsub.s32 0, %v1311
        %v1313 = vrot.slane %v1309, %v1312
        %v1314 = vadd.f32 %v1301, %v1313
        %v1315 = vadd.f32 %v1302, %v1313
        %v1316 = vadd.f32 %v1303, %v1313
        %v1317 = vadd.f32 %v1304, %v1313
        %v1318 = vadd.f32 %v1305, %v1313
        %v1319 = vadd.f32 %v1306, %v1313
        %v1320 = vadd.f32 %v1307, %v1313
        %v1321 = vadd.f32 %v1308, %v1313
        %v1322 = vmax.f32 %v1314, 0.0
        %v1323 = vmax.f32 %v1315, 0.0
        %v1324 = vmax.f32 %v1316, 0.0
        %v1325 = vmax.f32 %v1317, 0.0
        %v1326 = vmax.f32 %v1318, 0.0
        %v1327 = vmax.f32 %v1319, 0.0
        %v1328 = vmax.f32 %v1320, 0.0
        %v1329 = vmax.f32 %v1321, 0.0
        %v1330 = vpack.c.bf16 %v1323, %v1322
        %v1331 = vpack.c.bf16 %v1325, %v1324
        %v1332 = vpack.c.bf16 %v1327, %v1326
        %v1333 = vpack.c.bf16 %v1329, %v1328
        %v1334 = vld [vmem:[#allocation11] sm:$0xf]
        %v1336 = vsel %vm965, %v1330, 0
        %v1339 = vsel %vm965, %v1331, 0
        %v1342 = vsel %vm965, %v1332, 0
        %v1345 = vsel %vm965, %v1333, 0
        %v1348 = vsel %vm1051, %v1334, 0
        %1350 = vmatprep.subr.bf16.mxu0 0
        %1351 = vmatpush1.bf16.msra.mxu0 %v1348
        %1352 = vmatprep.subr.bf16.mxu0 0
        %1353 = vmatpush1.bf16.msra.mxu0 0
        %1354 = vmatprep.subr.bf16.mxu0 0
        %1355 = vmatpush1.bf16.msra.mxu0 0
        %1356 = vmatprep.subr.bf16.mxu0 0
        %1357 = vmatpush1.bf16.msra.mxu0 0
        %1358 = vmatprep.subr.bf16.mxu0 0
        %1359 = vmatpush1.bf16.msra.mxu0 0
        %1360 = vmatprep.subr.bf16.mxu0 0
        %1361 = vmatpush1.bf16.msra.mxu0 0
        %1362 = vmatprep.subr.bf16.mxu0 0
        %1363 = vmatpush1.bf16.msra.mxu0 0
        %1364 = vmatprep.subr.bf16.mxu0 0
        %1365 = vmatpush1.bf16.msra.mxu0 0
        %1366 = vmatprep.subr.bf16.mxu0 0
        %1367 = vmatpush1.bf16.msra.mxu0 0
        %1368 = vmatprep.subr.bf16.mxu0 0
        %1369 = vmatpush1.bf16.msra.mxu0 0
        %1370 = vmatprep.subr.bf16.mxu0 0
        %1371 = vmatpush1.bf16.msra.mxu0 0
        %1372 = vmatprep.subr.bf16.mxu0 0
        %1373 = vmatpush1.bf16.msra.mxu0 0
        %1374 = vmatprep.subr.bf16.mxu0 0
        %1375 = vmatpush1.bf16.msra.mxu0 0
        %1376 = vmatprep.subr.bf16.mxu0 0
        %1377 = vmatpush1.bf16.msra.mxu0 0
        %1378 = vmatprep.subr.bf16.mxu0 0
        %1379 = vmatpush1.bf16.msra.mxu0 0
        %1380 = vmatprep.subr.bf16.mxu0 0
        %1381 = vmatpush1.bf16.msra.mxu0 0
        %1382 = vmatprep.mubr.bf16.mxu0 0
        %1383 = vmatmul.mubr.bf16.gmra.mrb[0].mxu0 %v1336
        %v1384 = vpop.f32.mrb[0].mxu0
        %v1385 = vadd.f32 0.0, %v1384
        %v1386 = vpop.f32.mrb[0].mxu0
        %v1387 = vpop.f32.mrb[0].mxu0
        %v1388 = vadd.f32 0.0, %v1387
        %v1389 = vpop.f32.mrb[0].mxu0
        %1390 = vmatprep.mubr.bf16.mxu0 0
        %1391 = vmatmul.mubr.bf16.gmra.mrb[0].mxu0 %v1339
        %v1392 = vpop.f32.mrb[0].mxu0
        %v1393 = vadd.f32 0.0, %v1392
        %v1394 = vpop.f32.mrb[0].mxu0
        %v1395 = vpop.f32.mrb[0].mxu0
        %v1396 = vadd.f32 0.0, %v1395
        %v1397 = vpop.f32.mrb[0].mxu0
        %1398 = vmatprep.mubr.bf16.mxu0 0
        %1399 = vmatmul.mubr.bf16.gmra.mrb[0].mxu0 %v1342
        %v1400 = vpop.f32.mrb[0].mxu0
        %v1401 = vadd.f32 0.0, %v1400
        %v1402 = vpop.f32.mrb[0].mxu0
        %v1403 = vpop.f32.mrb[0].mxu0
        %v1404 = vadd.f32 0.0, %v1403
        %v1405 = vpop.f32.mrb[0].mxu0
        %1406 = vmatprep.mubr.bf16.mxu0 0
        %1407 = vmatmul.mubr.bf16.gmra.mrb[0].mxu0 %v1345
        %v1408 = vpop.f32.mrb[0].mxu0
        %v1409 = vadd.f32 0.0, %v1408
        %v1410 = vpop.f32.mrb[0].mxu0
        %v1411 = vpop.f32.mrb[0].mxu0
        %v1412 = vadd.f32 0.0, %v1411
        %v1413 = vpop.f32.mrb[0].mxu0
        %1414 = vdwg.mxu0
        %vm1415 = vcmask 261120
        %v1416 = vsel %vm1415, %v1385, -inf
        %1417 = vmax.xlane.f32.xlu0 %v1416
        %v1418 = vpop.xlane.xlu0 %1417
        %v1419 = vsel %vm1415, %v1388, -inf
        %1420 = vmax.xlane.f32.xlu0 %v1419
        %v1421 = vpop.xlane.xlu0 %1420
        %v1422 = vsel %vm1415, %v1393, -inf
        %1423 = vmax.xlane.f32.xlu0 %v1422
        %v1424 = vpop.xlane.xlu0 %1423
        %v1425 = vsel %vm1415, %v1396, -inf
        %1426 = vmax.xlane.f32.xlu0 %v1425
        %v1427 = vpop.xlane.xlu0 %1426
        %v1428 = vsel %vm1415, %v1401, -inf
        %1429 = vmax.xlane.f32.xlu0 %v1428
        %v1430 = vpop.xlane.xlu0 %1429
        %v1431 = vsel %vm1415, %v1404, -inf
        %1432 = vmax.xlane.f32.xlu0 %v1431
        %v1433 = vpop.xlane.xlu0 %1432
        %v1434 = vsel %vm1415, %v1409, -inf
        %1435 = vmax.xlane.f32.xlu0 %v1434
        %v1436 = vpop.xlane.xlu0 %1435
        %v1437 = vsel %vm1415, %v1412, -inf
        %1438 = vmax.xlane.f32.xlu0 %v1437
        %v1439 = vpop.xlane.xlu0 %1438
        %v1440 = vsel %vm1415, %v1385, 0.0
        %1441 = vadd.xlane.f32.xlu0 %v1440
        %v1442 = vpop.xlane.xlu0 %1441
        %v1443 = vsel %vm1415, %v1388, 0.0
        %1444 = vadd.xlane.f32.xlu0 %v1443
        %v1445 = vpop.xlane.xlu0 %1444
        %v1446 = vsel %vm1415, %v1393, 0.0
        %1447 = vadd.xlane.f32.xlu0 %v1446
        %v1448 = vpop.xlane.xlu0 %1447
        %v1449 = vsel %vm1415, %v1396, 0.0
        %1450 = vadd.xlane.f32.xlu0 %v1449
        %v1451 = vpop.xlane.xlu0 %1450
        %v1452 = vsel %vm1415, %v1401, 0.0
        %1453 = vadd.xlane.f32.xlu0 %v1452
        %v1454 = vpop.xlane.xlu0 %1453
        %v1455 = vsel %vm1415, %v1404, 0.0
        %1456 = vadd.xlane.f32.xlu0 %v1455
        %v1457 = vpop.xlane.xlu0 %1456
        %v1458 = vsel %vm1415, %v1409, 0.0
        %1459 = vadd.xlane.f32.xlu0 %v1458
        %v1460 = vpop.xlane.xlu0 %1459
        %v1461 = vsel %vm1415, %v1412, 0.0
        %1462 = vadd.xlane.f32.xlu0 %v1461
        %v1463 = vpop.xlane.xlu0 %1462
        %v1464 = vrcp.pop 32.0
        %v1465 = vmul.f32 %v1442, %v1464
        %v1466 = vmul.f32 %v1445, %v1464
        %v1467 = vmul.f32 %v1448, %v1464
        %v1468 = vmul.f32 %v1451, %v1464
        %v1469 = vmul.f32 %v1454, %v1464
        %v1470 = vmul.f32 %v1457, %v1464
        %v1471 = vmul.f32 %v1460, %v1464
        %v1472 = vmul.f32 %v1463, %v1464
        %vm1473 = vcmask 7168
        %v1474 = vsel %vm1473, %v1418, %v1465
        %v1475 = vsel %vm1473, %v1421, %v1466
        %v1476 = vsel %vm1473, %v1424, %v1467
        %v1477 = vsel %vm1473, %v1427, %v1468
        %v1478 = vsel %vm1473, %v1430, %v1469
        %v1479 = vsel %vm1473, %v1433, %v1470
        %v1480 = vsel %vm1473, %v1436, %v1471
        %v1481 = vsel %vm1473, %v1439, %v1472
        %v1490 = vrot.slane %v1474, 6
        %v1491 = vrot.slane %v1475, 6
        %v1492 = vrot.slane %v1476, 6
        %v1493 = vrot.slane %v1477, 6
        %v1494 = vrot.slane %v1478, 6
        %v1495 = vrot.slane %v1479, 6
        %v1496 = vrot.slane %v1480, 6
        %v1497 = vrot.slane %v1481, 6
        %vm1506 = vcmask 1041408
        %v1507 = vsel %vm1506, %v1490, %v1490
        %v1508 = vsel %vm1506, %v1491, %v1491
        %v1509 = vsel %vm1506, %v1492, %v1492
        %v1510 = vsel %vm1506, %v1493, %v1493
        %v1511 = vsel %vm1506, %v1494, %v1494
        %v1512 = vsel %vm1506, %v1495, %v1495
        %v1513 = vsel %vm1506, %v1496, %v1496
        %v1514 = vsel %vm1506, %v1497, %v1497
        %vm1515 = vcmp.ge.s32.totalorder %v849, 2
        %v1516 = vsel %vm1515, 1, 0
        %vm1517 = vcmp.eq.s32.totalorder %v1516, 1
        %v1518 = vsel %vm1517, %v1507, 0.0
        %v1519 = vsel %vm1517, %v1508, 0.0
        %v1520 = vsel %vm1517, %v1509, 0.0
        %v1521 = vsel %vm1517, %v1510, 0.0
        %v1522 = vsel %vm1517, %v1511, 0.0
        %v1523 = vsel %vm1517, %v1512, 0.0
        %v1524 = vsel %vm1517, %v1513, 0.0
        %v1525 = vsel %vm1517, %v1514, 0.0
        %v1526 = vrot.slane %v1474, 7
        %v1527 = vrot.slane %v1475, 7
        %v1528 = vrot.slane %v1476, 7
        %v1529 = vrot.slane %v1477, 7
        %v1530 = vrot.slane %v1478, 7
        %v1531 = vrot.slane %v1479, 7
        %v1532 = vrot.slane %v1480, 7
        %v1533 = vrot.slane %v1481, 7
        %vm1542 = vcmask 1040384
        %v1543 = vsel %vm1542, %v1526, %v1526
        %v1544 = vsel %vm1542, %v1527, %v1527
        %v1545 = vsel %vm1542, %v1528, %v1528
        %v1546 = vsel %vm1542, %v1529, %v1529
        %v1547 = vsel %vm1542, %v1530, %v1530
        %v1548 = vsel %vm1542, %v1531, %v1531
        %v1549 = vsel %vm1542, %v1532, %v1532
        %v1550 = vsel %vm1542, %v1533, %v1533
        %v1551 = vsel %vm852, %v1543, 0.0
        %v1552 = vsel %vm852, %v1544, 0.0
        %v1553 = vsel %vm852, %v1545, 0.0
        %v1554 = vsel %vm852, %v1546, 0.0
        %v1555 = vsel %vm852, %v1547, 0.0
        %v1556 = vsel %vm852, %v1548, 0.0
        %v1557 = vsel %vm852, %v1549, 0.0
        %v1558 = vsel %vm852, %v1550, 0.0
        %v1559 = vrot.slane %v1474, 1
        %v1560 = vrot.slane %v1475, 1
        %v1561 = vrot.slane %v1476, 1
        %v1562 = vrot.slane %v1477, 1
        %v1563 = vrot.slane %v1478, 1
        %v1564 = vrot.slane %v1479, 1
        %v1565 = vrot.slane %v1480, 1
        %v1566 = vrot.slane %v1481, 1
        %vm1575 = vcmask 1046528
        %v1576 = vsel %vm1575, %v1559, %v1559
        %v1577 = vsel %vm1575, %v1560, %v1560
        %v1578 = vsel %vm1575, %v1561, %v1561
        %v1579 = vsel %vm1575, %v1562, %v1562
        %v1580 = vsel %vm1575, %v1563, %v1563
        %v1581 = vsel %vm1575, %v1564, %v1564
        %v1582 = vsel %vm1575, %v1565, %v1565
        %v1583 = vsel %vm1575, %v1566, %v1566
        %v1584 = vsel %vm915, %v1576, 0.0
        %v1585 = vsel %vm915, %v1577, 0.0
        %v1586 = vsel %vm915, %v1578, 0.0
        %v1587 = vsel %vm915, %v1579, 0.0
        %v1588 = vsel %vm915, %v1580, 0.0
        %v1589 = vsel %vm915, %v1581, 0.0
        %v1590 = vsel %vm915, %v1582, 0.0
        %v1591 = vsel %vm915, %v1583, 0.0
        %v1592 = vrot.slane %v1474, 2
        %v1593 = vrot.slane %v1475, 2
        %v1594 = vrot.slane %v1476, 2
        %v1595 = vrot.slane %v1477, 2
        %v1596 = vrot.slane %v1478, 2
        %v1597 = vrot.slane %v1479, 2
        %v1598 = vrot.slane %v1480, 2
        %v1599 = vrot.slane %v1481, 2
        %vm1608 = vcmask 1045504
        %v1609 = vsel %vm1608, %v1592, %v1592
        %v1610 = vsel %vm1608, %v1593, %v1593
        %v1611 = vsel %vm1608, %v1594, %v1594
        %v1612 = vsel %vm1608, %v1595, %v1595
        %v1613 = vsel %vm1608, %v1596, %v1596
        %v1614 = vsel %vm1608, %v1597, %v1597
        %v1615 = vsel %vm1608, %v1598, %v1598
        %v1616 = vsel %vm1608, %v1599, %v1599
        %vm1617 = vcmp.lt.s32.totalorder %v849, 6
        %v1618 = vsel %vm1617, 1, 0
        %vm1619 = vcmp.eq.s32.totalorder %v1618, 1
        %v1620 = vsel %vm1619, %v1609, 0.0
        %v1621 = vsel %vm1619, %v1610, 0.0
        %v1622 = vsel %vm1619, %v1611, 0.0
        %v1623 = vsel %vm1619, %v1612, 0.0
        %v1624 = vsel %vm1619, %v1613, 0.0
        %v1625 = vsel %vm1619, %v1614, 0.0
        %v1626 = vsel %vm1619, %v1615, 0.0
        %v1627 = vsel %vm1619, %v1616, 0.0
        %1636 = vrot.lane.b32.xlu0 %v1551, 2
        %v1637 = vpop.permute.xlu0 %1636
        %1638 = vrot.lane.b32.xlu0 %v1552, 2
        %v1639 = vpop.permute.xlu0 %1638
        %1640 = vrot.lane.b32.xlu0 %v1553, 2
        %v1641 = vpop.permute.xlu0 %1640
        %1642 = vrot.lane.b32.xlu0 %v1554, 2
        %v1643 = vpop.permute.xlu0 %1642
        %1644 = vrot.lane.b32.xlu0 %v1555, 2
        %v1645 = vpop.permute.xlu0 %1644
        %1646 = vrot.lane.b32.xlu0 %v1556, 2
        %v1647 = vpop.permute.xlu0 %1646
        %1648 = vrot.lane.b32.xlu0 %v1557, 2
        %v1649 = vpop.permute.xlu0 %1648
        %1650 = vrot.lane.b32.xlu0 %v1558, 2
        %v1651 = vpop.permute.xlu0 %1650
        %1660 = vrot.lane.b32.xlu0 %v1474, 4
        %v1661 = vpop.permute.xlu0 %1660
        %1662 = vrot.lane.b32.xlu0 %v1475, 4
        %v1663 = vpop.permute.xlu0 %1662
        %1664 = vrot.lane.b32.xlu0 %v1476, 4
        %v1665 = vpop.permute.xlu0 %1664
        %1666 = vrot.lane.b32.xlu0 %v1477, 4
        %v1667 = vpop.permute.xlu0 %1666
        %1668 = vrot.lane.b32.xlu0 %v1478, 4
        %v1669 = vpop.permute.xlu0 %1668
        %1670 = vrot.lane.b32.xlu0 %v1479, 4
        %v1671 = vpop.permute.xlu0 %1670
        %1672 = vrot.lane.b32.xlu0 %v1480, 4
        %v1673 = vpop.permute.xlu0 %1672
        %1674 = vrot.lane.b32.xlu0 %v1481, 4
        %v1675 = vpop.permute.xlu0 %1674
        %1692 = vrot.lane.b32.xlu0 %v1584, 6
        %v1693 = vpop.permute.xlu0 %1692
        %1694 = vrot.lane.b32.xlu0 %v1585, 6
        %v1695 = vpop.permute.xlu0 %1694
        %1696 = vrot.lane.b32.xlu0 %v1586, 6
        %v1697 = vpop.permute.xlu0 %1696
        %1698 = vrot.lane.b32.xlu0 %v1587, 6
        %v1699 = vpop.permute.xlu0 %1698
        %1700 = vrot.lane.b32.xlu0 %v1588, 6
        %v1701 = vpop.permute.xlu0 %1700
        %1702 = vrot.lane.b32.xlu0 %v1589, 6
        %v1703 = vpop.permute.xlu0 %1702
        %1704 = vrot.lane.b32.xlu0 %v1590, 6
        %v1705 = vpop.permute.xlu0 %1704
        %1706 = vrot.lane.b32.xlu0 %v1591, 6
        %v1707 = vpop.permute.xlu0 %1706
        %1724 = vrot.lane.b32.xlu0 %v1620, 8
        %v1725 = vpop.permute.xlu0 %1724
        %1726 = vrot.lane.b32.xlu0 %v1621, 8
        %v1727 = vpop.permute.xlu0 %1726
        %1728 = vrot.lane.b32.xlu0 %v1622, 8
        %v1729 = vpop.permute.xlu0 %1728
        %1730 = vrot.lane.b32.xlu0 %v1623, 8
        %v1731 = vpop.permute.xlu0 %1730
        %1732 = vrot.lane.b32.xlu0 %v1624, 8
        %v1733 = vpop.permute.xlu0 %1732
        %1734 = vrot.lane.b32.xlu0 %v1625, 8
        %v1735 = vpop.permute.xlu0 %1734
        %1736 = vrot.lane.b32.xlu0 %v1626, 8
        %v1737 = vpop.permute.xlu0 %1736
        %1738 = vrot.lane.b32.xlu0 %v1627, 8
        %v1739 = vpop.permute.xlu0 %1738
        %vm1748 = vcmask 15360
        %v1749 = vsel %vm1748, %v1518, %v1637
        %v1750 = vsel %vm1748, %v1519, %v1639
        %v1751 = vsel %vm1748, %v1520, %v1641
        %v1752 = vsel %vm1748, %v1521, %v1643
        %v1753 = vsel %vm1748, %v1522, %v1645
        %v1754 = vsel %vm1748, %v1523, %v1647
        %v1755 = vsel %vm1748, %v1524, %v1649
        %v1756 = vsel %vm1748, %v1525, %v1651
        %vm1757 = vcmask 31744
        %v1758 = vsel %vm1757, %v1749, %v1661
        %v1759 = vsel %vm1757, %v1750, %v1663
        %v1760 = vsel %vm1757, %v1751, %v1665
        %v1761 = vsel %vm1757, %v1752, %v1667
        %v1762 = vsel %vm1757, %v1753, %v1669
        %v1763 = vsel %vm1757, %v1754, %v1671
        %v1764 = vsel %vm1757, %v1755, %v1673
        %v1765 = vsel %vm1757, %v1756, %v1675
        %vm1766 = vcmask 48128
        %v1767 = vsel %vm1766, %v1758, %v1693
        %v1768 = vsel %vm1766, %v1759, %v1695
        %v1769 = vsel %vm1766, %v1760, %v1697
        %v1770 = vsel %vm1766, %v1761, %v1699
        %v1771 = vsel %vm1766, %v1762, %v1701
        %v1772 = vsel %vm1766, %v1763, %v1703
        %v1773 = vsel %vm1766, %v1764, %v1705
        %v1774 = vsel %vm1766, %v1765, %v1707
        %v1775 = vsel %vm965, %v1767, %v1725
        %v1776 = vsel %vm965, %v1768, %v1727
        %v1777 = vsel %vm965, %v1769, %v1729
        %v1778 = vsel %vm965, %v1770, %v1731
        %v1779 = vsel %vm965, %v1771, %v1733
        %v1780 = vsel %vm965, %v1772, %v1735
        %v1781 = vsel %vm965, %v1773, %v1737
        %v1782 = vsel %vm965, %v1774, %v1739
        %v1783 = vld [vmem:[#allocation17] sm:$0x1]
        %v1784 = vlaneseq
        %v1785 = vshrl.u32 %v1784, 7
        %v1786 = vsub.s32 0, %v1785
        %v1787 = vrot.slane %v1783, %v1786
        %v1788 = vmul.f32 %v1775, %v1787
        %v1789 = vmul.f32 %v1776, %v1787
        %v1790 = vmul.f32 %v1777, %v1787
        %v1791 = vmul.f32 %v1778, %v1787
        %v1792 = vmul.f32 %v1779, %v1787
        %v1793 = vmul.f32 %v1780, %v1787
        %vm1794 = vcmask 80896
        %v1795 = vsel %vm1794, %v1788, 0.0
        %1796 = vadd.xlane.f32.xlu0 %v1795
        %v1797 = vpop.xlane.xlu0 %1796
        %v1798 = vsel %vm1794, %v1789, 0.0
        %1799 = vadd.xlane.f32.xlu0 %v1798
        %v1800 = vpop.xlane.xlu0 %1799
        %v1801 = vsel %vm1794, %v1790, 0.0
        %1802 = vadd.xlane.f32.xlu0 %v1801
        %v1803 = vpop.xlane.xlu0 %1802
        %v1804 = vsel %vm1794, %v1791, 0.0
        %1805 = vadd.xlane.f32.xlu0 %v1804
        %v1806 = vpop.xlane.xlu0 %1805
        %v1807 = vsel %vm1794, %v1792, 0.0
        %1808 = vadd.xlane.f32.xlu0 %v1807
        %v1809 = vpop.xlane.xlu0 %1808
        %v1810 = vsel %vm1794, %v1793, 0.0
        %1811 = vadd.xlane.f32.xlu0 %v1810
        %v1812 = vpop.xlane.xlu0 %1811
        %v1813 = vld [vmem:[#allocation17 + $0x1] sm:$0x1]
        %v1814 = vlaneseq
        %v1815 = vshrl.u32 %v1814, 7
        %v1816 = vsub.s32 0, %v1815
        %v1817 = vrot.slane %v1813, %v1816
        %v1818 = vmul.f32 %v1775, %v1817
        %v1819 = vmul.f32 %v1776, %v1817
        %v1820 = vmul.f32 %v1777, %v1817
        %v1821 = vmul.f32 %v1778, %v1817
        %v1822 = vmul.f32 %v1779, %v1817
        %v1823 = vmul.f32 %v1780, %v1817
        %v1824 = vmul.f32 %v1781, %v1817
        %v1825 = vsel %vm1794, %v1818, 0.0
        %1826 = vadd.xlane.f32.xlu0 %v1825
        %v1827 = vpop.xlane.xlu0 %1826
        %v1828 = vsel %vm1794, %v1819, 0.0
        %1829 = vadd.xlane.f32.xlu0 %v1828
        %v1830 = vpop.xlane.xlu0 %1829
        %v1831 = vsel %vm1794, %v1820, 0.0
        %1832 = vadd.xlane.f32.xlu0 %v1831
        %v1833 = vpop.xlane.xlu0 %1832
        %v1834 = vsel %vm1794, %v1821, 0.0
        %1835 = vadd.xlane.f32.xlu0 %v1834
        %v1836 = vpop.xlane.xlu0 %1835
        %v1837 = vsel %vm1794, %v1822, 0.0
        %1838 = vadd.xlane.f32.xlu0 %v1837
        %v1839 = vpop.xlane.xlu0 %1838
        %v1840 = vsel %vm1794, %v1823, 0.0
        %1841 = vadd.xlane.f32.xlu0 %v1840
        %v1842 = vpop.xlane.xlu0 %1841
        %v1843 = vsel %vm1794, %v1824, 0.0
        %1844 = vadd.xlane.f32.xlu0 %v1843
        %v1845 = vpop.xlane.xlu0 %1844
        %v1846 = vadd.f32 %v1827, 0.0
        %v1847 = vadd.f32 %v1797, %v1830
        %v1848 = vadd.f32 %v1800, %v1833
        %v1849 = vadd.f32 %v1803, %v1836
        %v1850 = vadd.f32 %v1806, %v1839
        %v1851 = vadd.f32 %v1809, %v1842
        %v1852 = vadd.f32 %v1812, %v1845
        %v1853 = vld [vmem:[#allocation17 + $0x2] sm:$0x1]
        %v1854 = vlaneseq
        %v1855 = vshrl.u32 %v1854, 7
        %v1856 = vsub.s32 0, %v1855
        %v1857 = vrot.slane %v1853, %v1856
        %v1858 = vmul.f32 %v1775, %v1857
        %v1859 = vmul.f32 %v1776, %v1857
        %v1860 = vmul.f32 %v1777, %v1857
        %v1861 = vmul.f32 %v1778, %v1857
        %v1862 = vmul.f32 %v1779, %v1857
        %v1863 = vmul.f32 %v1780, %v1857
        %v1864 = vmul.f32 %v1781, %v1857
        %v1865 = vmul.f32 %v1782, %v1857
        %v1866 = vsel %vm1794, %v1858, 0.0
        %1867 = vadd.xlane.f32.xlu0 %v1866
        %v1868 = vpop.xlane.xlu0 %1867
        %v1869 = vsel %vm1794, %v1859, 0.0
        %1870 = vadd.xlane.f32.xlu0 %v1869
        %v1871 = vpop.xlane.xlu0 %1870
        %v1872 = vsel %vm1794, %v1860, 0.0
        %1873 = vadd.xlane.f32.xlu0 %v1872
        %v1874 = vpop.xlane.xlu0 %1873
        %v1875 = vsel %vm1794, %v1861, 0.0
        %1876 = vadd.xlane.f32.xlu0 %v1875
        %v1877 = vpop.xlane.xlu0 %1876
        %v1878 = vsel %vm1794, %v1862, 0.0
        %1879 = vadd.xlane.f32.xlu0 %v1878
        %v1880 = vpop.xlane.xlu0 %1879
        %v1881 = vsel %vm1794, %v1863, 0.0
        %1882 = vadd.xlane.f32.xlu0 %v1881
        %v1883 = vpop.xlane.xlu0 %1882
        %v1884 = vsel %vm1794, %v1864, 0.0
        %1885 = vadd.xlane.f32.xlu0 %v1884
        %v1886 = vpop.xlane.xlu0 %1885
        %v1887 = vsel %vm1794, %v1865, 0.0
        %1888 = vadd.xlane.f32.xlu0 %v1887
        %v1889 = vpop.xlane.xlu0 %1888
        %v1890 = vadd.f32 %v1868, 0.0
        %v1891 = vadd.f32 %v1846, %v1871
        %v1892 = vadd.f32 %v1847, %v1874
        %v1893 = vadd.f32 %v1848, %v1877
        %v1894 = vadd.f32 %v1849, %v1880
        %v1895 = vadd.f32 %v1850, %v1883
        %v1896 = vadd.f32 %v1851, %v1886
        %v1897 = vadd.f32 %v1852, %v1889
        %v1898 = vld [vmem:[#allocation17 + $0x3] sm:$0x1]
        %v1899 = vlaneseq
        %v1900 = vshrl.u32 %v1899, 7
        %v1901 = vsub.s32 0, %v1900
        %v1902 = vrot.slane %v1898, %v1901
        %v1903 = vmul.f32 %v1776, %v1902
        %v1904 = vmul.f32 %v1777, %v1902
        %v1905 = vmul.f32 %v1778, %v1902
        %v1906 = vmul.f32 %v1779, %v1902
        %v1907 = vmul.f32 %v1780, %v1902
        %v1908 = vmul.f32 %v1781, %v1902
        %v1909 = vmul.f32 %v1782, %v1902
        %v1910 = vsel %vm1794, %v1903, 0.0
        %1911 = vadd.xlane.f32.xlu0 %v1910
        %v1912 = vpop.xlane.xlu0 %1911
        %v1913 = vsel %vm1794, %v1904, 0.0
        %1914 = vadd.xlane.f32.xlu0 %v1913
        %v1915 = vpop.xlane.xlu0 %1914
        %v1916 = vsel %vm1794, %v1905, 0.0
        %1917 = vadd.xlane.f32.xlu0 %v1916
        %v1918 = vpop.xlane.xlu0 %1917
        %v1919 = vsel %vm1794, %v1906, 0.0
        %1920 = vadd.xlane.f32.xlu0 %v1919
        %v1921 = vpop.xlane.xlu0 %1920
        %v1922 = vsel %vm1794, %v1907, 0.0
        %1923 = vadd.xlane.f32.xlu0 %v1922
        %v1924 = vpop.xlane.xlu0 %1923
        %v1925 = vsel %vm1794, %v1908, 0.0
        %1926 = vadd.xlane.f32.xlu0 %v1925
        %v1927 = vpop.xlane.xlu0 %1926
        %v1928 = vsel %vm1794, %v1909, 0.0
        %1929 = vadd.xlane.f32.xlu0 %v1928
        %v1930 = vpop.xlane.xlu0 %1929
        %v1931 = vadd.f32 %v1890, %v1912
        %v1932 = vadd.f32 %v1891, %v1915
        %v1933 = vadd.f32 %v1892, %v1918
        %v1934 = vadd.f32 %v1893, %v1921
        %v1935 = vadd.f32 %v1894, %v1924
        %v1936 = vadd.f32 %v1895, %v1927
        %v1937 = vadd.f32 %v1896, %v1930
        %v1938 = vadd.f32 %v1897, 0.0
        %v1939 = vld [vmem:[#allocation17 + $0x4] sm:$0x1]
        %v1940 = vlaneseq
        %v1941 = vshrl.u32 %v1940, 7
        %v1942 = vsub.s32 0, %v1941
        %v1943 = vrot.slane %v1939, %v1942
        %v1944 = vmul.f32 %v1777, %v1943
        %v1945 = vmul.f32 %v1778, %v1943
        %v1946 = vmul.f32 %v1779, %v1943
        %v1947 = vmul.f32 %v1780, %v1943
        %v1948 = vmul.f32 %v1781, %v1943
        %v1949 = vmul.f32 %v1782, %v1943
        %v1950 = vsel %vm1794, %v1944, 0.0
        %1951 = vadd.xlane.f32.xlu0 %v1950
        %v1952 = vpop.xlane.xlu0 %1951
        %v1953 = vsel %vm1794, %v1945, 0.0
        %1954 = vadd.xlane.f32.xlu0 %v1953
        %v1955 = vpop.xlane.xlu0 %1954
        %v1956 = vsel %vm1794, %v1946, 0.0
        %1957 = vadd.xlane.f32.xlu0 %v1956
        %v1958 = vpop.xlane.xlu0 %1957
        %v1959 = vsel %vm1794, %v1947, 0.0
        %1960 = vadd.xlane.f32.xlu0 %v1959
        %v1961 = vpop.xlane.xlu0 %1960
        %v1962 = vsel %vm1794, %v1948, 0.0
        %1963 = vadd.xlane.f32.xlu0 %v1962
        %v1964 = vpop.xlane.xlu0 %1963
        %v1965 = vsel %vm1794, %v1949, 0.0
        %1966 = vadd.xlane.f32.xlu0 %v1965
        %v1967 = vpop.xlane.xlu0 %1966
        %v1968 = vadd.f32 %v1931, %v1952
        %v1969 = vadd.f32 %v1932, %v1955
        %v1970 = vadd.f32 %v1933, %v1958
        %v1971 = vadd.f32 %v1934, %v1961
        %v1972 = vadd.f32 %v1935, %v1964
        %v1973 = vadd.f32 %v1936, %v1967
        %v1974 = vadd.f32 %v1937, 0.0
        %v1975 = vadd.f32 %v1938, 0.0
        %s1976 = sld [smem:[#allocation2]]
        %v1977 = vstv %s1976
        %v1978 = vadd.f32 %v1968, %v1977
        %v1979 = vadd.f32 %v1969, %v1977
        %v1980 = vadd.f32 %v1970, %v1977
        %v1981 = vadd.f32 %v1971, %v1977
        %v1982 = vadd.f32 %v1972, %v1977
        %v1983 = vadd.f32 %v1973, %v1977
        %v1984 = vadd.f32 %v1974, %v1977
        %v1985 = vadd.f32 %v1975, %v1977
        %v1986 = vxor.u32 %v1978, 2147483648
        %v1987 = vxor.u32 %v1979, 2147483648
        %v1988 = vxor.u32 %v1980, 2147483648
        %v1989 = vxor.u32 %v1981, 2147483648
        %v1990 = vxor.u32 %v1982, 2147483648
        %v1991 = vxor.u32 %v1983, 2147483648
        %v1992 = vxor.u32 %v1984, 2147483648
        %v1993 = vxor.u32 %v1985, 2147483648
        %v1994 = vmul.f32 %v1986, 1.442695
        %v1995 = vpow.pop %v1994
        %v1996 = vmul.f32 %v1987, 1.442695
        %v1997 = vpow.pop %v1996
        %v1998 = vmul.f32 %v1988, 1.442695
        %v1999 = vpow.pop %v1998
        %v2000 = vmul.f32 %v1989, 1.442695
        %v2001 = vpow.pop %v2000
        %v2002 = vmul.f32 %v1990, 1.442695
        %v2003 = vpow.pop %v2002
        %v2004 = vmul.f32 %v1991, 1.442695
        %v2005 = vpow.pop %v2004
        %v2006 = vmul.f32 %v1992, 1.442695
        %v2007 = vpow.pop %v2006
        %v2008 = vmul.f32 %v1993, 1.442695
        %v2009 = vpow.pop %v2008
        %v2010 = vadd.f32 %v1995, 1.0
        %v2011 = vadd.f32 %v1997, 1.0
        %v2012 = vadd.f32 %v1999, 1.0
        %v2013 = vadd.f32 %v2001, 1.0
        %v2014 = vadd.f32 %v2003, 1.0
        %v2015 = vadd.f32 %v2005, 1.0
        %v2016 = vadd.f32 %v2007, 1.0
        %v2017 = vadd.f32 %v2009, 1.0
        %v2018 = vrcp.pop %v2010
        %v2019 = vmul.f32 1.0, %v2018
        %v2020 = vrcp.pop %v2011
        %v2021 = vmul.f32 1.0, %v2020
        %v2022 = vrcp.pop %v2012
        %v2023 = vmul.f32 1.0, %v2022
        %v2024 = vrcp.pop %v2013
        %v2025 = vmul.f32 1.0, %v2024
        %v2026 = vrcp.pop %v2014
        %v2027 = vmul.f32 1.0, %v2026
        %v2028 = vrcp.pop %v2015
        %v2029 = vmul.f32 1.0, %v2028
        %v2030 = vrcp.pop %v2016
        %v2031 = vmul.f32 1.0, %v2030
        %v2032 = vrcp.pop %v2017
        %v2033 = vmul.f32 1.0, %v2032
        %v2034 = vxor.u32 %v2019, 2147483648
        %v2035 = vxor.u32 %v2021, 2147483648
        %v2036 = vxor.u32 %v2023, 2147483648
        %v2037 = vxor.u32 %v2025, 2147483648
        %v2038 = vxor.u32 %v2027, 2147483648
        %v2039 = vxor.u32 %v2029, 2147483648
        %v2040 = vxor.u32 %v2031, 2147483648
        %v2041 = vxor.u32 %v2033, 2147483648
        %v2042 = vmul.f32 %v2034, 1.442695
        %v2043 = vpow.pop %v2042
        %v2044 = vmul.f32 %v2035, 1.442695
        %v2045 = vpow.pop %v2044
        %v2046 = vmul.f32 %v2036, 1.442695
        %v2047 = vpow.pop %v2046
        %v2048 = vmul.f32 %v2037, 1.442695
        %v2049 = vpow.pop %v2048
        %v2050 = vmul.f32 %v2038, 1.442695
        %v2051 = vpow.pop %v2050
        %v2052 = vmul.f32 %v2039, 1.442695
        %v2053 = vpow.pop %v2052
        %v2054 = vmul.f32 %v2040, 1.442695
        %v2055 = vpow.pop %v2054
        %v2056 = vmul.f32 %v2041, 1.442695
        %v2057 = vpow.pop %v2056
        %v2058 = vadd.f32 %v2043, 1.0
        %v2059 = vadd.f32 %v2045, 1.0
        %v2060 = vadd.f32 %v2047, 1.0
        %v2061 = vadd.f32 %v2049, 1.0
        %v2062 = vadd.f32 %v2051, 1.0
        %v2063 = vadd.f32 %v2053, 1.0
        %v2064 = vadd.f32 %v2055, 1.0
        %v2065 = vadd.f32 %v2057, 1.0
        %v2066 = vrcp.pop %v2058
        %v2067 = vmul.f32 1.0, %v2066
        %v2068 = vrcp.pop %v2059
        %v2069 = vmul.f32 1.0, %v2068
        %v2070 = vrcp.pop %v2060
        %v2071 = vmul.f32 1.0, %v2070
        %v2072 = vrcp.pop %v2061
        %v2073 = vmul.f32 1.0, %v2072
        %v2074 = vrcp.pop %v2062
        %v2075 = vmul.f32 1.0, %v2074
        %v2076 = vrcp.pop %v2063
        %v2077 = vmul.f32 1.0, %v2076
        %v2078 = vrcp.pop %v2064
        %v2079 = vmul.f32 1.0, %v2078
        %v2080 = vrcp.pop %v2065
        %v2081 = vmul.f32 1.0, %v2080
        %2083 = vset.pattern.permute.xlu0 0
        %2084 = vperm.xlu0 %2083, %v2067
        %v2085 = vpop.permute.xlu0 %2084
        %2088 = vset.pattern.permute.xlu0 0
        %2089 = vperm.xlu0 %2088, %v2069
        %v2090 = vpop.permute.xlu0 %2089
        %2093 = vset.pattern.permute.xlu0 0
        %2094 = vperm.xlu0 %2093, %v2071
        %v2095 = vpop.permute.xlu0 %2094
        %2098 = vset.pattern.permute.xlu0 0
        %2099 = vperm.xlu0 %2098, %v2073
        %v2100 = vpop.permute.xlu0 %2099
        %2103 = vset.pattern.permute.xlu0 0
        %2104 = vperm.xlu0 %2103, %v2075
        %v2105 = vpop.permute.xlu0 %2104
        %2108 = vset.pattern.permute.xlu0 0
        %2109 = vperm.xlu0 %2108, %v2077
        %v2110 = vpop.permute.xlu0 %2109
        %2113 = vset.pattern.permute.xlu0 0
        %2114 = vperm.xlu0 %2113, %v2079
        %v2115 = vpop.permute.xlu0 %2114
        %2118 = vset.pattern.permute.xlu0 0
        %2119 = vperm.xlu0 %2118, %v2081
        %v2120 = vpop.permute.xlu0 %2119
        %v2122 = vmul.f32 %v1385, %v2085
        %v2123 = vmul.f32 %v1388, %v2090
        %v2124 = vmul.f32 %v1393, %v2095
        %v2125 = vmul.f32 %v1396, %v2100
        %v2126 = vmul.f32 %v1401, %v2105
        %v2127 = vmul.f32 %v1404, %v2110
        %v2128 = vmul.f32 %v1409, %v2115
        %v2129 = vmul.f32 %v1412, %v2120
        %v2130 = vadd.f32 %v2122, %v596
        %v2131 = vadd.f32 %v2123, %v599
        %v2132 = vadd.f32 %v2124, %v604
        %v2133 = vadd.f32 %v2125, %v607
        %v2134 = vadd.f32 %v2126, %v612
        %v2135 = vadd.f32 %v2127, %v615
        %v2136 = vadd.f32 %v2128, %v620
        %v2137 = vadd.f32 %v2129, %v623
        %2138 = vst.msk [vmem:[%s484] sm:$0xff] %vm1415, %v2130
        %2139 = vst.msk [vmem:[%s484 + $0x8] sm:$0xff] %vm1415, %v2131
        %2140 = vst.msk [vmem:[%s484 + $0x10] sm:$0xff] %vm1415, %v2132
        %2141 = vst.msk [vmem:[%s484 + $0x18] sm:$0xff] %vm1415, %v2133
        %2142 = vst.msk [vmem:[%s484 + $0x20] sm:$0xff] %vm1415, %v2134
        %2143 = vst.msk [vmem:[%s484 + $0x28] sm:$0xff] %vm1415, %v2135
        %2144 = vst.msk [vmem:[%s484 + $0x30] sm:$0xff] %vm1415, %v2136
        %2145 = vst.msk [vmem:[%s484 + $0x38] sm:$0xff] %vm1415, %v2137
        %s2146 = sand.u32 %s255, 1
        %s2147 = scalar_lea.sflag [#allocation5], %s2146
        %s2148 = sand.u32 %s255, 1
        %s2149 = smul.addr %s2148, 64
        %s2150 = scalar_lea.vmem [#allocation18], %s2149
        // Predicated region
        $region97: #{tpu_custom_call.1} parent=59 // pred_check
          %p2151 = pneg %p265
        $region98: #{tpu_custom_call.1} parent=59 // pred_check_branch
          %2153 = sbr.rel (%p2151) target = $region100
        $region99: #{tpu_custom_call.1} parent=59 // pred_region
          %s2155 = ssub.s32 1024, 1024
          %2156 = vsyncadd %s2147, %s2155
          %s2157 = smul.addr %s32, 8
          %s2158 = smul.addr %s2157, 128
          %s2159 = scalar_lea.hbm %s10, %s2158
          %s2160 = sshll.u32 %s2150, 4
          %s2161 = int_to_ptr.vmem [resolvable:$true] %s2160
          %2166 = dma.vmem_to_hbm [thread:$0]  %s2161, 1024, %s2159, %s2147, 128, 128, 8
        $region100: #{tpu_custom_call.1} parent=59 // pred_fallthru
          _
      $region60: #{tpu_custom_call.1} parent=5 // pred_fallthru
        _
      %p2167 = scmp.le.s32.totalorder 2, %s27
      // Predicated region
      $region101: #{tpu_custom_call.1} parent=5 // pred_check
        %p2168 = pneg %p2167
      $region102: #{tpu_custom_call.1} parent=5 // pred_check_branch
        %2170 = sbr.rel (%p2168) target = $region104
      $region103: #{tpu_custom_call.1} parent=5 // pred_region
        %s2171 = ssub.s32 %s27, 2
        // Predicated region
        $region105: #{tpu_custom_call.1} parent=103 // pred_check
          %p2172 = pneg %p271
        $region106: #{tpu_custom_call.1} parent=103 // pred_check_branch
          %2174 = sbr.rel (%p2172) target = $region108
        $region107: #{tpu_custom_call.1} parent=103 // pred_region
          %s2175 = sand.u32 %s256, 1
          %s2176 = scalar_lea.sflag [#allocation5], %s2175
          %s2177 = sand.u32 %s256, 1
          %s2178 = smul.addr %s2177, 64
          %s2179 = scalar_lea.vmem [#allocation18], %s2178
          %2180 = dma.done %s2176, 1024
        $region108: #{tpu_custom_call.1} parent=103 // pred_fallthru
          _
      $region104: #{tpu_custom_call.1} parent=5 // pred_fallthru
        _
    $region6: #{tpu_custom_call.1} parent=1 // loop_footer
      %s31 = sadd.s32 1, %s27
    $region7: #{tpu_custom_call.1} parent=1 // loop_footer_branch
      %26 = sbr.rel target = $region3
    $region8: #{tpu_custom_call.1} parent=1 // loop_exit
      _
    %2181 = vsyncpa [#allocation4], 1
    %s2182 = scalar_lea.sflag [#allocation4], 1
    %2183 = vsyncpa %s2182, 1
    %2184 = vsyncpa [#allocation7], 1
    %2185 = vsyncpa [#allocation10], 1
    %2186 = vsyncpa [#allocation13], 1
    %2187 = vsyncpa [#allocation16], 1
    %2188 = vsyncpa [#allocation5], 1
    %s2189 = scalar_lea.sflag [#allocation5], 1
    %2190 = vsyncpa %s2189, 1

</llo_original>
